<compile_context>
chip_gen: v5e
topology: v5e:2x2
jax: 0.10.0
libtpu: 0.0.40
codegen_flags: <defaults>
</compile_context>

<pallas_src>
import functools

import jax
import jax.numpy as jnp
from jax import lax
from jax.experimental import pallas as pl
from jax.experimental.pallas import tpu as pltpu


_LANES = 128      # fused head width / loss-slab lane width (one lane group)
_OUT_ROWS = 8     # sublane-aligned rows per per-half output block


def _round_up(x, m):
    return ((x + m - 1) // m) * m


def _pad_tile_bytes(shape, dtype):
    """Rough VMEM footprint of one tiled buffer (sublane/lane padded)."""
    s = list(shape)
    s[-1] = _round_up(s[-1], 128)
    if len(s) >= 2:
        s[-2] = _round_up(s[-2], 8)
    n = 1
    for d in s:
        n *= d
    return n * jnp.dtype(dtype).itemsize


# ----------------------------------------------------------------------------
# Fused kernel: chunked recurrent rollout + fused head + CE / sigmoid-MSE sums
# ----------------------------------------------------------------------------
def _fused_kernel(tc, Bh, A,
                  feats_ref, len_ref, tgt_ref, gtaux_ref,
                  wxh_ref, whh_ref, bh_ref, whead_ref, bhead_ref,
                  out_ref,
                  h_carry, hid_chunk):
    t_chunk = pl.program_id(1)

    # ---- init per batch half (first time-chunk)
    @pl.when(t_chunk == 0)
    def _():
        h_carry[...] = jnp.zeros_like(h_carry)
        out_ref[...] = jnp.zeros_like(out_ref)

    n = tc * Bh
    F = feats_ref.shape[-1]

    lengths = len_ref[...]                               # (Bh, 1) int32
    whh = whh_ref[...]                                   # (H, H)  bf16

    # ---- hoisted input projection for the whole chunk, written straight into
    #      the single hidden scratch (updated in place by the recurrence).
    x2d = feats_ref[...].reshape(n, F)                   # (n, F) bf16
    hid_chunk[...] = (jnp.dot(x2d, wxh_ref[...],
                              preferred_element_type=jnp.float32)
                      + bh_ref[...])                     # (n, H) f32

    # ---- sequential recurrence over the chunk (short static unroll: tc steps)
    t_base = t_chunk * tc
    h = h_carry[...]                                     # (Bh, H) f32
    for i in range(tc):
        # mask[t] = lengths > t  (t==0 force-False is a no-op: carry is zeros)
        mask = (lengths > (t_base + i)).astype(jnp.float32)   # (Bh, 1)
        h_prev = (h * mask).astype(jnp.bfloat16)
        row = i * Bh
        h = jnp.tanh(hid_chunk[pl.ds(row, Bh), :]
                     + jnp.dot(h_prev, whh,
                               preferred_element_type=jnp.float32))
        hid_chunk[pl.ds(row, Bh), :] = h                 # in-place update
    h_carry[...] = h

    # ---- fused action+aux head: one lane-dense MXU pass over chunk hiddens
    hs = hid_chunk[...].astype(jnp.bfloat16)             # (n, H)
    head = (jnp.dot(hs, whead_ref[...], preferred_element_type=jnp.float32)
            + bhead_ref[...])                            # (n, 128) f32

    col = lax.broadcasted_iota(jnp.int32, (n, _LANES), 1)
    logits = jnp.where(col < A, head, -1e30)             # mask padded lanes

    tgt = tgt_ref[...].reshape(n, 1)                     # (n, 1) int32
    valid = tgt != -100                                  # ignore_index
    validf = valid.astype(jnp.float32)
    safe_tgt = jnp.where(valid, tgt, 0)
    onehot = (col == safe_tgt).astype(jnp.float32)

    m = jnp.max(logits, axis=1, keepdims=True)           # (n, 1)
    lse = m + jnp.log(jnp.sum(jnp.exp(logits - m), axis=1, keepdims=True))
    picked = jnp.sum(logits * onehot, axis=1, keepdims=True)
    ce_rows = (lse - picked) * validf                    # (n, 1)

    aux = head[:, A:A + 2]                               # (n, 2) prog/goal
    sig = 1.0 / (1.0 + jnp.exp(-aux))                    # exact sigmoid
    sq = ((sig - gtaux_ref[...].reshape(n, 2)) ** 2) * validf   # (n, 2)

    # ---- accumulate partial SUMS into the resident output block:
    #      lane 0 = CE sum, 1 = progress sq sum, 2 = goal sq sum, 3 = n_valid
    contrib = (jnp.where(col == 0, ce_rows, 0.0)
               + jnp.where(col == 1, sq[:, 0:1], 0.0)
               + jnp.where(col == 2, sq[:, 1:2], 0.0)
               + jnp.where(col == 3, validf, 0.0))       # (n, 128)
    out_ref[...] += jnp.sum(contrib, axis=0, keepdims=True)


def run_fused(feats_tm, lengths_col, tgt_tm, gtaux_tm, weights,
              *, tc, nb, Bh, A):
    Tp, Bp, F = feats_tm.shape
    H = weights['wxh'].shape[1]
    NC = Tp // tc
    assert Bp == nb * Bh and Tp % tc == 0

    kernel = functools.partial(_fused_kernel, tc, Bh, A)

    in_specs = [
        pl.BlockSpec((tc, Bh, F), lambda b, t: (t, b, 0)),   # feats chunk
        pl.BlockSpec((Bh, 1), lambda b, t: (b, 0)),          # lengths (half)
        pl.BlockSpec((tc, Bh, 1), lambda b, t: (t, b, 0)),   # gt action chunk
        pl.BlockSpec((tc, Bh, 2), lambda b, t: (t, b, 0)),   # gt prog/goal
        pl.BlockSpec((F, H), lambda b, t: (0, 0)),           # Wxh
        pl.BlockSpec((H, H), lambda b, t: (0, 0)),           # Whh
        pl.BlockSpec((1, H), lambda b, t: (0, 0)),           # bh
        pl.BlockSpec((H, _LANES), lambda b, t: (0, 0)),      # fused head W
        pl.BlockSpec((1, _LANES), lambda b, t: (0, 0)),      # fused head b
    ]
    out_specs = pl.BlockSpec((_OUT_ROWS, _LANES), lambda b, t: (b, 0))
    out_shape = jax.ShapeDtypeStruct((nb * _OUT_ROWS, _LANES), jnp.float32)
    scratch_shapes = [
        pltpu.VMEM((Bh, H), jnp.float32),          # recurrent carry
        pltpu.VMEM((tc * Bh, H), jnp.float32),     # chunk hiddens (in-place)
    ]

    # Re-derived scoped-VMEM budget: blocks (double-buffered) + scratch,
    # generous safety factor, capped below v7x's 64 MiB physical VMEM.
    blocks = [((tc, Bh, F), jnp.bfloat16), ((Bh, 1), jnp.int32),
              ((tc, Bh, 1), jnp.int32), ((tc, Bh, 2), jnp.float32),
              ((F, H), jnp.bfloat16), ((H, H), jnp.bfloat16),
              ((1, H), jnp.float32), ((H, _LANES), jnp.bfloat16),
              ((1, _LANES), jnp.float32), ((_OUT_ROWS, _LANES), jnp.float32)]
    est = sum(2 * _pad_tile_bytes(s, d) for s, d in blocks)
    est += _pad_tile_bytes((Bh, H), jnp.float32)
    est += _pad_tile_bytes((tc * Bh, H), jnp.float32)
    vmem_bytes = int(min(max(4 * est, 8 * 1024 * 1024), 48 * 1024 * 1024))

    return pl.pallas_call(
        kernel,
        out_shape=out_shape,
        grid_spec=pltpu.PrefetchScalarGridSpec(
            num_scalar_prefetch=0,
            grid=(nb, NC),
            in_specs=in_specs,
            out_specs=out_specs,
            scratch_shapes=scratch_shapes),
        compiler_params=pltpu.CompilerParams(
            dimension_semantics=("parallel", "arbitrary"),
            vmem_limit_bytes=vmem_bytes),
    )(feats_tm, lengths_col, tgt_tm, gtaux_tm,
      weights['wxh'], weights['whh'], weights['bh'],
      weights['w_head'], weights['b_head'])


# ----------------------------------------------------------------------------
# Forward (mirrors ImgGoalTrainer.forward, inference/loss path)
# ----------------------------------------------------------------------------
def img_goal_trainer_forward(batch, params, *, tc=4, nb=2):
    train_info, aux_info, _vis_info = batch

    # .to(dtype=torch.float) on every obs
    feats = train_info['visual_features'].astype(jnp.float32)   # (B, T, F)
    action = train_info['action'].astype(jnp.float32)           # (B, T)
    obj = train_info['object'].astype(jnp.float32)               # (B, n, k, c)
    gt_progress = aux_info['progress'].astype(jnp.float32)       # (B, T)
    gt_is_goal = aux_info['is_goal'].astype(jnp.float32)         # (B, T)

    # train_info['object'][i, :, :, 0] = i  (batch-index tagging; glue only —
    # consumed by the external agent CNN encoders, not by the kernel below)
    b_idx = jnp.arange(obj.shape[0], dtype=jnp.float32)[:, None, None]
    obj = obj.at[:, :, :, 0].set(jnp.broadcast_to(b_idx, obj.shape[:3]))
    # TODO(synk): env_wrapper.step / joblib graph loading / agent CNN encoders
    # are external I/O & modules; the fused kernel consumes precomputed
    # visual features instead.

    B, T = action.shape
    F = feats.shape[-1]
    H = params['wxh'].shape[1]
    A = params['wa'].shape[1]
    assert A + 2 <= _LANES

    # lengths = (action > -10).sum(dim=1)
    lengths = jnp.sum(action > -10.0, axis=1).astype(jnp.int32)  # (B,)

    # Pad time to a multiple of tc (chunked grid) and batch to nb halves of
    # >=16 rows (bf16 sublane tile). Padded rows/steps carry length 0 and
    # target -100, so they contribute nothing to the recurrence or losses.
    Bh = _round_up(max(1, -(-B // nb)), 16)
    Bp = nb * Bh
    Tp = _round_up(T, tc)
    pad_b, pad_t = Bp - B, Tp - T

    feats_tm = jnp.transpose(feats, (1, 0, 2))                    # (T, B, F)
    feats_tm = jnp.pad(feats_tm, ((0, pad_t), (0, pad_b), (0, 0)))
    feats_tm = feats_tm.astype(jnp.bfloat16)                      # bf16 MXU op

    lengths_col = jnp.pad(lengths, (0, pad_b)).reshape(Bp, 1)

    tgt_tm = jnp.transpose(action, (1, 0)).astype(jnp.int32)      # (T, B)
    tgt_tm = jnp.pad(tgt_tm, ((0, pad_t), (0, pad_b)), constant_values=-100)
    tgt_tm = tgt_tm.reshape(Tp, Bp, 1)

    gtaux_tm = jnp.stack([jnp.transpose(gt_progress, (1, 0)),
                          jnp.transpose(gt_is_goal, (1, 0))], axis=-1)
    gtaux_tm = jnp.pad(gtaux_tm, ((0, pad_t), (0, pad_b), (0, 0)))  # (Tp,Bp,2)

    # Fuse action + progress + goal heads into one lane-dense (H, 128) weight.
    w_head = jnp.concatenate([params['wa'], params['wp'], params['wg']], axis=1)
    b_head = jnp.concatenate([params['ba'], params['bp'], params['bg']], axis=1)
    w_head = jnp.pad(w_head, ((0, 0), (0, _LANES - (A + 2)))).astype(jnp.bfloat16)
    b_head = jnp.pad(b_head, ((0, 0), (0, _LANES - (A + 2)))).astype(jnp.float32)

    weights = {
        'wxh': params['wxh'].astype(jnp.bfloat16),
        'whh': params['whh'].astype(jnp.bfloat16),
        'bh': params['bh'].astype(jnp.float32),
        'w_head': w_head,
        'b_head': b_head,
    }

    out = run_fused(feats_tm, lengths_col, tgt_tm, gtaux_tm, weights,
                    tc=tc, nb=nb, Bh=Bh, A=A)            # (nb*8, 128)

    # Combine per-half partial sums, normalize by the global valid count.
    sums = out.reshape(nb, _OUT_ROWS, _LANES)[:, 0, :]   # (nb, 128)
    n_valid = jnp.maximum(jnp.sum(sums[:, 3]), 1.0)
    act_loss = jnp.sum(sums[:, 0]) / n_valid
    progress = jnp.sum(sums[:, 1]) / n_valid
    is_goal = jnp.sum(sums[:, 2]) / n_valid
    total_loss = act_loss + progress + is_goal

    # TODO(synk): optimizer.zero_grad()/backward()/step() (training update)
    # has no Pallas-forward equivalent; this reproduces the loss computation.
    results = {}
    loss_dict = {
        'act_loss': act_loss,
        'progress': progress,
        'is_goal': is_goal,
        'total_loss': total_loss,
    }
    return results, loss_dict


if __name__ == "__main__":
    key = jax.random.PRNGKey(0)
    keys = jax.random.split(key, 10)

    # small shapes: B=4 episodes, T=8 steps, feature_dim=32, hidden=32, 6 actions
    B, T, F, H, A = 4, 8, 32, 32, 6

    params = {
        'wxh': 0.1 * jax.random.normal(keys[0], (F, H), jnp.float32),
        'whh': 0.1 * jax.random.normal(keys[1], (H, H), jnp.float32),
        'bh':  jnp.zeros((1, H), jnp.float32),
        'wa':  0.1 * jax.random.normal(keys[2], (H, A), jnp.float32),
        'ba':  jnp.zeros((1, A), jnp.float32),
        'wp':  0.1 * jax.random.normal(keys[3], (H, 1), jnp.float32),
        'bp':  jnp.zeros((1, 1), jnp.float32),
        'wg':  0.1 * jax.random.normal(keys[4], (H, 1), jnp.float32),
        'bg':  jnp.zeros((1, 1), jnp.float32),
    }

    feats = jax.random.normal(keys[5], (B, T, F), jnp.float32)
    lengths = jnp.array([T, 6, 5, 7], dtype=jnp.int32)             # max == T
    act_vals = jax.random.randint(keys[6], (B, T), 0, A)
    t_grid = jnp.arange(T)[None, :]
    action = jnp.where(t_grid < lengths[:, None], act_vals, -100).astype(jnp.float32)
    obj = jax.random.normal(keys[7], (B, 3, 5, 4), jnp.float32)
    gt_progress = jax.random.uniform(keys[8], (B, T), jnp.float32)
    gt_is_goal = (jax.random.uniform(keys[9], (B, T)) > 0.8).astype(jnp.float32)

    batch = (
        {'visual_features': feats, 'action': action, 'object': obj},
        {'progress': gt_progress, 'is_goal': gt_is_goal},
        {},
    )

    results, loss_dict = img_goal_trainer_forward(batch, params)
    jax.block_until_ready(loss_dict['total_loss'])
    print("KERNEL_OK")
</pallas_src>

<mosaic_0001>
module attributes {stable_mosaic.version = 11 : i64} {
  func.func @_fused_kernel(%arg0: i32, %arg1: i32, %arg2: memref<4x16x32xbf16, #tpu.memory_space<vmem>>, %arg3: memref<16x1xi32, #tpu.memory_space<vmem>>, %arg4: memref<4x16x1xi32, #tpu.memory_space<vmem>>, %arg5: memref<4x16x2xf32, #tpu.memory_space<vmem>>, %arg6: memref<32x32xbf16, #tpu.memory_space<vmem>>, %arg7: memref<32x32xbf16, #tpu.memory_space<vmem>>, %arg8: memref<1x32xf32, #tpu.memory_space<vmem>>, %arg9: memref<32x128xbf16, #tpu.memory_space<vmem>>, %arg10: memref<1x128xf32, #tpu.memory_space<vmem>>, %arg11: memref<8x128xf32, #tpu.memory_space<vmem>>, %arg12: memref<16x32xf32, #tpu.memory_space<vmem>>, %arg13: memref<64x32xf32, #tpu.memory_space<vmem>>) attributes {dimension_semantics = [#tpu.dimension_semantics<parallel>, #tpu.dimension_semantics<arbitrary>], iteration_bounds = array<i64: 2, 2>, scalar_prefetch = 0 : i64, scratch_operands = 2 : i64, tpu.core_type = #tpu.core_type<tc>, window_params = [{transform_indices = @transform_0, window_bounds = array<i64: 4, 16, 32>}, {transform_indices = @transform_1, window_bounds = array<i64: 16, 1>}, {transform_indices = @transform_2, window_bounds = array<i64: 4, 16, 1>}, {transform_indices = @transform_3, window_bounds = array<i64: 4, 16, 2>}, {pipeline_mode = #tpu.pipeline_mode<synchronous>, transform_indices = @transform_4, window_bounds = array<i64: 32, 32>}, {pipeline_mode = #tpu.pipeline_mode<synchronous>, transform_indices = @transform_5, window_bounds = array<i64: 32, 32>}, {pipeline_mode = #tpu.pipeline_mode<synchronous>, transform_indices = @transform_6, window_bounds = array<i64: 1, 32>}, {pipeline_mode = #tpu.pipeline_mode<synchronous>, transform_indices = @transform_7, window_bounds = array<i64: 32, 128>}, {pipeline_mode = #tpu.pipeline_mode<synchronous>, transform_indices = @transform_8, window_bounds = array<i64: 1, 128>}, {transform_indices = @transform_9, window_bounds = array<i64: 8, 128>}]} {
    %c0_i32 = arith.constant 0 : i32
    %0 = arith.cmpi eq, %arg1, %c0_i32 : i32
    %1 = arith.extui %0 : i1 to i32
    %c0_i32_0 = arith.constant 0 : i32
    %2 = arith.cmpi ne, %1, %c0_i32_0 : i32
    scf.if %2 {
      %cst_69 = arith.constant 0.000000e+00 : f32
      %155 = vector.broadcast %cst_69 : f32 to vector<16x32xf32>
      %c0_70 = arith.constant 0 : index
      %c0_71 = arith.constant 0 : index
      %156 = vector.load %arg12[%c0_70, %c0_71] : memref<16x32xf32, #tpu.memory_space<vmem>>, vector<16x32xf32>
      tpu.vector_store %arg12[%c0_70, %c0_71], %155 {strides = array<i32>} : memref<16x32xf32, #tpu.memory_space<vmem>>, vector<16x32xf32>,
      %cst_72 = arith.constant 0.000000e+00 : f32
      %157 = vector.broadcast %cst_72 : f32 to vector<8x128xf32>
      %c0_73 = arith.constant 0 : index
      %c0_74 = arith.constant 0 : index
      %158 = vector.load %arg11[%c0_73, %c0_74] : memref<8x128xf32, #tpu.memory_space<vmem>>, vector<8x128xf32>
      tpu.vector_store %arg11[%c0_73, %c0_74], %157 {strides = array<i32>} : memref<8x128xf32, #tpu.memory_space<vmem>>, vector<8x128xf32>,
    } else {
    }
    %c0 = arith.constant 0 : index
    %c0_1 = arith.constant 0 : index
    %3 = vector.load %arg3[%c0, %c0_1] : memref<16x1xi32, #tpu.memory_space<vmem>>, vector<16x1xi32>
    %c0_2 = arith.constant 0 : index
    %c0_3 = arith.constant 0 : index
    %4 = vector.load %arg7[%c0_2, %c0_3] : memref<32x32xbf16, #tpu.memory_space<vmem>>, vector<32x32xbf16>
    %c0_4 = arith.constant 0 : index
    %c0_5 = arith.constant 0 : index
    %c0_6 = arith.constant 0 : index
    %5 = vector.load %arg2[%c0_4, %c0_5, %c0_6] : memref<4x16x32xbf16, #tpu.memory_space<vmem>>, vector<4x16x32xbf16>
    %6 = vector.shape_cast %5 : vector<4x16x32xbf16> to vector<64x32xbf16>
    %c0_7 = arith.constant 0 : index
    %c0_8 = arith.constant 0 : index
    %7 = vector.load %arg6[%c0_7, %c0_8] : memref<32x32xbf16, #tpu.memory_space<vmem>>, vector<32x32xbf16>
    %cst = arith.constant dense<0.000000e+00> : vector<64x32xf32>
    %8 = tpu.matmul %6, %7, %cst {dimension_numbers = #tpu.dot_dimension_numbers<[1], [0], [0], [1], [0, 0, 1, 1], [], []>} : vector<64x32xbf16>, vector<32x32xbf16>, vector<64x32xf32> -> vector<64x32xf32>
    %c0_9 = arith.constant 0 : index
    %c0_10 = arith.constant 0 : index
    %9 = vector.load %arg8[%c0_9, %c0_10] : memref<1x32xf32, #tpu.memory_space<vmem>>, vector<1x32xf32>
    %10 = vector.broadcast %9 : vector<1x32xf32> to vector<64x32xf32>
    %11 = arith.addf %8, %10 : vector<64x32xf32>
    %c0_11 = arith.constant 0 : index
    %c0_12 = arith.constant 0 : index
    %12 = vector.load %arg13[%c0_11, %c0_12] : memref<64x32xf32, #tpu.memory_space<vmem>>, vector<64x32xf32>
    tpu.vector_store %arg13[%c0_11, %c0_12], %11 {strides = array<i32>} : memref<64x32xf32, #tpu.memory_space<vmem>>, vector<64x32xf32>,
    %c4_i32 = arith.constant 4 : i32
    %13 = arith.muli %arg1, %c4_i32 : i32
    %c0_13 = arith.constant 0 : index
    %c0_14 = arith.constant 0 : index
    %14 = vector.load %arg12[%c0_13, %c0_14] : memref<16x32xf32, #tpu.memory_space<vmem>>, vector<16x32xf32>
    %c0_i32_15 = arith.constant 0 : i32
    %15 = arith.addi %13, %c0_i32_15 : i32
    %16 = vector.broadcast %15 : i32 to vector<16x1xi32>
    %17 = arith.cmpi sgt, %3, %16 : vector<16x1xi32>
    %18 = arith.extui %17 : vector<16x1xi1> to vector<16x1xi32>
    %19 = arith.sitofp %18 : vector<16x1xi32> to vector<16x1xf32>
    %20 = vector.broadcast %19 : vector<16x1xf32> to vector<16x32xf32>
    %21 = arith.mulf %14, %20 : vector<16x32xf32>
    %22 = arith.truncf %21 : vector<16x32xf32> to vector<16x32xbf16>
    %c0_16 = arith.constant 0 : index
    %c0_17 = arith.constant 0 : index
    %23 = vector.load %arg13[%c0_16, %c0_17] : memref<64x32xf32, #tpu.memory_space<vmem>>, vector<16x32xf32>
    %cst_18 = arith.constant dense<0.000000e+00> : vector<16x32xf32>
    %24 = tpu.matmul %22, %4, %cst_18 {dimension_numbers = #tpu.dot_dimension_numbers<[1], [0], [0], [1], [0, 0, 1, 1], [], []>} : vector<16x32xbf16>, vector<32x32xbf16>, vector<16x32xf32> -> vector<16x32xf32>
    %25 = arith.addf %23, %24 : vector<16x32xf32>
    %26 = math.tanh %25 : vector<16x32xf32>
    %c0_19 = arith.constant 0 : index
    %c0_20 = arith.constant 0 : index
    %27 = vector.load %arg13[%c0_19, %c0_20] : memref<64x32xf32, #tpu.memory_space<vmem>>, vector<16x32xf32>
    tpu.vector_store %arg13[%c0_19, %c0_20], %26 {strides = array<i32>} : memref<64x32xf32, #tpu.memory_space<vmem>>, vector<16x32xf32>,
    %c1_i32 = arith.constant 1 : i32
    %28 = arith.addi %13, %c1_i32 : i32
    %29 = vector.broadcast %28 : i32 to vector<16x1xi32>
    %30 = arith.cmpi sgt, %3, %29 : vector<16x1xi32>
    %31 = arith.extui %30 : vector<16x1xi1> to vector<16x1xi32>
    %32 = arith.sitofp %31 : vector<16x1xi32> to vector<16x1xf32>
    %33 = vector.broadcast %32 : vector<16x1xf32> to vector<16x32xf32>
    %34 = arith.mulf %26, %33 : vector<16x32xf32>
    %35 = arith.truncf %34 : vector<16x32xf32> to vector<16x32xbf16>
    %c16 = arith.constant 16 : index
    %c0_21 = arith.constant 0 : index
    %36 = vector.load %arg13[%c16, %c0_21] : memref<64x32xf32, #tpu.memory_space<vmem>>, vector<16x32xf32>
    %cst_22 = arith.constant dense<0.000000e+00> : vector<16x32xf32>
    %37 = tpu.matmul %35, %4, %cst_22 {dimension_numbers = #tpu.dot_dimension_numbers<[1], [0], [0], [1], [0, 0, 1, 1], [], []>} : vector<16x32xbf16>, vector<32x32xbf16>, vector<16x32xf32> -> vector<16x32xf32>
    %38 = arith.addf %36, %37 : vector<16x32xf32>
    %39 = math.tanh %38 : vector<16x32xf32>
    %c16_23 = arith.constant 16 : index
    %c0_24 = arith.constant 0 : index
    %40 = vector.load %arg13[%c16_23, %c0_24] : memref<64x32xf32, #tpu.memory_space<vmem>>, vector<16x32xf32>
    tpu.vector_store %arg13[%c16_23, %c0_24], %39 {strides = array<i32>} : memref<64x32xf32, #tpu.memory_space<vmem>>, vector<16x32xf32>,
    %c2_i32 = arith.constant 2 : i32
    %41 = arith.addi %13, %c2_i32 : i32
    %42 = vector.broadcast %41 : i32 to vector<16x1xi32>
    %43 = arith.cmpi sgt, %3, %42 : vector<16x1xi32>
    %44 = arith.extui %43 : vector<16x1xi1> to vector<16x1xi32>
    %45 = arith.sitofp %44 : vector<16x1xi32> to vector<16x1xf32>
    %46 = vector.broadcast %45 : vector<16x1xf32> to vector<16x32xf32>
    %47 = arith.mulf %39, %46 : vector<16x32xf32>
    %48 = arith.truncf %47 : vector<16x32xf32> to vector<16x32xbf16>
    %c32 = arith.constant 32 : index
    %c0_25 = arith.constant 0 : index
    %49 = vector.load %arg13[%c32, %c0_25] : memref<64x32xf32, #tpu.memory_space<vmem>>, vector<16x32xf32>
    %cst_26 = arith.constant dense<0.000000e+00> : vector<16x32xf32>
    %50 = tpu.matmul %48, %4, %cst_26 {dimension_numbers = #tpu.dot_dimension_numbers<[1], [0], [0], [1], [0, 0, 1, 1], [], []>} : vector<16x32xbf16>, vector<32x32xbf16>, vector<16x32xf32> -> vector<16x32xf32>
    %51 = arith.addf %49, %50 : vector<16x32xf32>
    %52 = math.tanh %51 : vector<16x32xf32>
    %c32_27 = arith.constant 32 : index
    %c0_28 = arith.constant 0 : index
    %53 = vector.load %arg13[%c32_27, %c0_28] : memref<64x32xf32, #tpu.memory_space<vmem>>, vector<16x32xf32>
    tpu.vector_store %arg13[%c32_27, %c0_28], %52 {strides = array<i32>} : memref<64x32xf32, #tpu.memory_space<vmem>>, vector<16x32xf32>,
    %c3_i32 = arith.constant 3 : i32
    %54 = arith.addi %13, %c3_i32 : i32
    %55 = vector.broadcast %54 : i32 to vector<16x1xi32>
    %56 = arith.cmpi sgt, %3, %55 : vector<16x1xi32>
    %57 = arith.extui %56 : vector<16x1xi1> to vector<16x1xi32>
    %58 = arith.sitofp %57 : vector<16x1xi32> to vector<16x1xf32>
    %59 = vector.broadcast %58 : vector<16x1xf32> to vector<16x32xf32>
    %60 = arith.mulf %52, %59 : vector<16x32xf32>
    %61 = arith.truncf %60 : vector<16x32xf32> to vector<16x32xbf16>
    %c48 = arith.constant 48 : index
    %c0_29 = arith.constant 0 : index
    %62 = vector.load %arg13[%c48, %c0_29] : memref<64x32xf32, #tpu.memory_space<vmem>>, vector<16x32xf32>
    %cst_30 = arith.constant dense<0.000000e+00> : vector<16x32xf32>
    %63 = tpu.matmul %61, %4, %cst_30 {dimension_numbers = #tpu.dot_dimension_numbers<[1], [0], [0], [1], [0, 0, 1, 1], [], []>} : vector<16x32xbf16>, vector<32x32xbf16>, vector<16x32xf32> -> vector<16x32xf32>
    %64 = arith.addf %62, %63 : vector<16x32xf32>
    %65 = math.tanh %64 : vector<16x32xf32>
    %c48_31 = arith.constant 48 : index
    %c0_32 = arith.constant 0 : index
    %66 = vector.load %arg13[%c48_31, %c0_32] : memref<64x32xf32, #tpu.memory_space<vmem>>, vector<16x32xf32>
    tpu.vector_store %arg13[%c48_31, %c0_32], %65 {strides = array<i32>} : memref<64x32xf32, #tpu.memory_space<vmem>>, vector<16x32xf32>,
    %c0_33 = arith.constant 0 : index
    %c0_34 = arith.constant 0 : index
    %67 = vector.load %arg12[%c0_33, %c0_34] : memref<16x32xf32, #tpu.memory_space<vmem>>, vector<16x32xf32>
    tpu.vector_store %arg12[%c0_33, %c0_34], %65 {strides = array<i32>} : memref<16x32xf32, #tpu.memory_space<vmem>>, vector<16x32xf32>,
    %c0_35 = arith.constant 0 : index
    %c0_36 = arith.constant 0 : index
    %68 = vector.load %arg13[%c0_35, %c0_36] : memref<64x32xf32, #tpu.memory_space<vmem>>, vector<64x32xf32>
    %69 = arith.truncf %68 : vector<64x32xf32> to vector<64x32xbf16>
    %c0_37 = arith.constant 0 : index
    %c0_38 = arith.constant 0 : index
    %70 = vector.load %arg9[%c0_37, %c0_38] : memref<32x128xbf16, #tpu.memory_space<vmem>>, vector<32x128xbf16>
    %cst_39 = arith.constant dense<0.000000e+00> : vector<64x128xf32>
    %71 = tpu.matmul %69, %70, %cst_39 {dimension_numbers = #tpu.dot_dimension_numbers<[1], [0], [0], [1], [0, 0, 1, 1], [], []>} : vector<64x32xbf16>, vector<32x128xbf16>, vector<64x128xf32> -> vector<64x128xf32>
    %c0_40 = arith.constant 0 : index
    %c0_41 = arith.constant 0 : index
    %72 = vector.load %arg10[%c0_40, %c0_41] : memref<1x128xf32, #tpu.memory_space<vmem>>, vector<1x128xf32>
    %73 = vector.broadcast %72 : vector<1x128xf32> to vector<64x128xf32>
    %74 = arith.addf %71, %73 : vector<64x128xf32>
    %75 = tpu.iota {dimensions = array<i32: 1>} : vector<64x128xi32>
    %c6_i32 = arith.constant 6 : i32
    %76 = vector.broadcast %c6_i32 : i32 to vector<64x128xi32>
    %77 = arith.cmpi slt, %75, %76 : vector<64x128xi32>
    %cst_42 = arith.constant -1.000000e+30 : f32
    %78 = vector.broadcast %cst_42 : f32 to vector<64x128xf32>
    %79 = arith.select %77, %74, %78 : vector<64x128xi1>, vector<64x128xf32>
    %c0_43 = arith.constant 0 : index
    %c0_44 = arith.constant 0 : index
    %c0_45 = arith.constant 0 : index
    %80 = vector.load %arg4[%c0_43, %c0_44, %c0_45] : memref<4x16x1xi32, #tpu.memory_space<vmem>>, vector<4x16x1xi32>
    %81 = vector.shape_cast %80 : vector<4x16x1xi32> to vector<64x1xi32>
    %c-100_i32 = arith.constant -100 : i32
    %82 = vector.broadcast %c-100_i32 : i32 to vector<64x1xi32>
    %83 = arith.cmpi ne, %81, %82 : vector<64x1xi32>
    %84 = arith.extui %83 : vector<64x1xi1> to vector<64x1xi32>
    %85 = arith.sitofp %84 : vector<64x1xi32> to vector<64x1xf32>
    %c0_i32_46 = arith.constant 0 : i32
    %86 = vector.broadcast %c0_i32_46 : i32 to vector<64x1xi32>
    %87 = arith.select %83, %81, %86 : vector<64x1xi1>, vector<64x1xi32>
    %88 = vector.broadcast %87 : vector<64x1xi32> to vector<64x128xi32>
    %89 = arith.cmpi eq, %75, %88 : vector<64x128xi32>
    %90 = arith.extui %89 : vector<64x128xi1> to vector<64x128xi32>
    %91 = arith.sitofp %90 : vector<64x128xi32> to vector<64x128xf32>
    %cst_47 = arith.constant dense<0xFF800000> : vector<64xf32>
    %92 = vector.multi_reduction <maximumf>, %79, %cst_47 [1] : vector<64x128xf32> to vector<64xf32>
    %93 = vector.shape_cast %92 : vector<64xf32> to vector<64x1xf32>
    %94 = vector.broadcast %93 : vector<64x1xf32> to vector<64x128xf32>
    %95 = arith.subf %79, %94 : vector<64x128xf32>
    %96 = math.exp %95 : vector<64x128xf32>
    %cst_48 = arith.constant dense<0.000000e+00> : vector<64xf32>
    %97 = vector.multi_reduction <add>, %96, %cst_48 [1] : vector<64x128xf32> to vector<64xf32>
    %98 = vector.shape_cast %97 : vector<64xf32> to vector<64x1xf32>
    %99 = math.log %98 : vector<64x1xf32>
    %100 = arith.addf %93, %99 : vector<64x1xf32>
    %101 = arith.mulf %79, %91 : vector<64x128xf32>
    %cst_49 = arith.constant dense<0.000000e+00> : vector<64xf32>
    %102 = vector.multi_reduction <add>, %101, %cst_49 [1] : vector<64x128xf32> to vector<64xf32>
    %103 = vector.shape_cast %102 : vector<64xf32> to vector<64x1xf32>
    %104 = arith.subf %100, %103 : vector<64x1xf32>
    %105 = arith.mulf %104, %85 : vector<64x1xf32>
    %106 = vector.extract_strided_slice %74 {offsets = [0, 6], sizes = [64, 2], strides = [1, 1]} : vector<64x128xf32> to vector<64x2xf32>
    %cst_50 = arith.constant 0.000000e+00 : f32
    %107 = vector.broadcast %cst_50 : f32 to vector<64x2xf32>
    %108 = arith.subf %107, %106 : vector<64x2xf32>
    %109 = math.exp %108 : vector<64x2xf32>
    %cst_51 = arith.constant 1.000000e+00 : f32
    %110 = vector.broadcast %cst_51 : f32 to vector<64x2xf32>
    %111 = arith.addf %110, %109 : vector<64x2xf32>
    %cst_52 = arith.constant 1.000000e+00 : f32
    %112 = vector.broadcast %cst_52 : f32 to vector<64x2xf32>
    %113 = arith.divf %112, %111 : vector<64x2xf32>
    %c0_53 = arith.constant 0 : index
    %c0_54 = arith.constant 0 : index
    %c0_55 = arith.constant 0 : index
    %114 = vector.load %arg5[%c0_53, %c0_54, %c0_55] : memref<4x16x2xf32, #tpu.memory_space<vmem>>, vector<4x16x2xf32>
    %115 = vector.shape_cast %114 : vector<4x16x2xf32> to vector<64x2xf32>
    %116 = arith.subf %113, %115 : vector<64x2xf32>
    %117 = arith.mulf %116, %116 : vector<64x2xf32>
    %118 = vector.broadcast %85 : vector<64x1xf32> to vector<64x2xf32>
    %119 = arith.mulf %117, %118 : vector<64x2xf32>
    %c0_i32_56 = arith.constant 0 : i32
    %120 = vector.broadcast %c0_i32_56 : i32 to vector<64x128xi32>
    %121 = arith.cmpi eq, %75, %120 : vector<64x128xi32>
    %cst_57 = arith.constant 0.000000e+00 : f32
    %122 = vector.shape_cast %105 : vector<64x1xf32> to vector<64x1xf32>
    %123 = vector.broadcast %122 : vector<64x1xf32> to vector<64x128xf32>
    %124 = vector.broadcast %cst_57 : f32 to vector<64x128xf32>
    %125 = arith.select %121, %123, %124 : vector<64x128xi1>, vector<64x128xf32>
    %c1_i32_58 = arith.constant 1 : i32
    %126 = vector.broadcast %c1_i32_58 : i32 to vector<64x128xi32>
    %127 = arith.cmpi eq, %75, %126 : vector<64x128xi32>
    %128 = vector.extract_strided_slice %119 {offsets = [0, 0], sizes = [64, 1], strides = [1, 1]} : vector<64x2xf32> to vector<64x1xf32>
    %cst_59 = arith.constant 0.000000e+00 : f32
    %129 = vector.shape_cast %128 : vector<64x1xf32> to vector<64x1xf32>
    %130 = vector.broadcast %129 : vector<64x1xf32> to vector<64x128xf32>
    %131 = vector.broadcast %cst_59 : f32 to vector<64x128xf32>
    %132 = arith.select %127, %130, %131 : vector<64x128xi1>, vector<64x128xf32>
    %133 = arith.addf %125, %132 : vector<64x128xf32>
    %c2_i32_60 = arith.constant 2 : i32
    %134 = vector.broadcast %c2_i32_60 : i32 to vector<64x128xi32>
    %135 = arith.cmpi eq, %75, %134 : vector<64x128xi32>
    %136 = vector.extract_strided_slice %119 {offsets = [0, 1], sizes = [64, 1], strides = [1, 1]} : vector<64x2xf32> to vector<64x1xf32>
    %cst_61 = arith.constant 0.000000e+00 : f32
    %137 = vector.shape_cast %136 : vector<64x1xf32> to vector<64x1xf32>
    %138 = vector.broadcast %137 : vector<64x1xf32> to vector<64x128xf32>
    %139 = vector.broadcast %cst_61 : f32 to vector<64x128xf32>
    %140 = arith.select %135, %138, %139 : vector<64x128xi1>, vector<64x128xf32>
    %141 = arith.addf %133, %140 : vector<64x128xf32>
    %c3_i32_62 = arith.constant 3 : i32
    %142 = vector.broadcast %c3_i32_62 : i32 to vector<64x128xi32>
    %143 = arith.cmpi eq, %75, %142 : vector<64x128xi32>
    %cst_63 = arith.constant 0.000000e+00 : f32
    %144 = vector.shape_cast %85 : vector<64x1xf32> to vector<64x1xf32>
    %145 = vector.broadcast %144 : vector<64x1xf32> to vector<64x128xf32>
    %146 = vector.broadcast %cst_63 : f32 to vector<64x128xf32>
    %147 = arith.select %143, %145, %146 : vector<64x128xi1>, vector<64x128xf32>
    %148 = arith.addf %141, %147 : vector<64x128xf32>
    %c0_64 = arith.constant 0 : index
    %c0_65 = arith.constant 0 : index
    %149 = vector.load %arg11[%c0_64, %c0_65] : memref<8x128xf32, #tpu.memory_space<vmem>>, vector<8x128xf32>
    %cst_66 = arith.constant dense<0.000000e+00> : vector<128xf32>
    %150 = vector.multi_reduction <add>, %148, %cst_66 [0] : vector<64x128xf32> to vector<128xf32>
    %151 = vector.shape_cast %150 : vector<128xf32> to vector<1x128xf32>
    %152 = vector.broadcast %151 : vector<1x128xf32> to vector<8x128xf32>
    %153 = arith.addf %149, %152 : vector<8x128xf32>
    %c0_67 = arith.constant 0 : index
    %c0_68 = arith.constant 0 : index
    %154 = vector.load %arg11[%c0_67, %c0_68] : memref<8x128xf32, #tpu.memory_space<vmem>>, vector<8x128xf32>
    tpu.vector_store %arg11[%c0_67, %c0_68], %153 {strides = array<i32>} : memref<8x128xf32, #tpu.memory_space<vmem>>, vector<8x128xf32>,
    return
  }
  func.func @transform_0(%arg0: i32, %arg1: i32) -> (i32, i32, i32) {
    %c0_i32 = arith.constant 0 : i32
    %c0_i32_0 = arith.constant 0 : i32
    return %arg1, %arg0, %c0_i32 : i32, i32, i32
  }
  func.func @transform_1(%arg0: i32, %arg1: i32) -> (i32, i32) {
    %c0_i32 = arith.constant 0 : i32
    %c0_i32_0 = arith.constant 0 : i32
    return %arg0, %c0_i32 : i32, i32
  }
  func.func @transform_2(%arg0: i32, %arg1: i32) -> (i32, i32, i32) {
    %c0_i32 = arith.constant 0 : i32
    %c0_i32_0 = arith.constant 0 : i32
    return %arg1, %arg0, %c0_i32 : i32, i32, i32
  }
  func.func @transform_3(%arg0: i32, %arg1: i32) -> (i32, i32, i32) {
    %c0_i32 = arith.constant 0 : i32
    %c0_i32_0 = arith.constant 0 : i32
    return %arg1, %arg0, %c0_i32 : i32, i32, i32
  }
  func.func @transform_4(%arg0: i32, %arg1: i32) -> (i32, i32) {
    %c0_i32 = arith.constant 0 : i32
    %c0_i32_0 = arith.constant 0 : i32
    %c0_i32_1 = arith.constant 0 : i32
    return %c0_i32, %c0_i32_0 : i32, i32
  }
  func.func @transform_5(%arg0: i32, %arg1: i32) -> (i32, i32) {
    %c0_i32 = arith.constant 0 : i32
    %c0_i32_0 = arith.constant 0 : i32
    %c0_i32_1 = arith.constant 0 : i32
    return %c0_i32, %c0_i32_0 : i32, i32
  }
  func.func @transform_6(%arg0: i32, %arg1: i32) -> (i32, i32) {
    %c0_i32 = arith.constant 0 : i32
    %c0_i32_0 = arith.constant 0 : i32
    %c0_i32_1 = arith.constant 0 : i32
    return %c0_i32, %c0_i32_0 : i32, i32
  }
  func.func @transform_7(%arg0: i32, %arg1: i32) -> (i32, i32) {
    %c0_i32 = arith.constant 0 : i32
    %c0_i32_0 = arith.constant 0 : i32
    %c0_i32_1 = arith.constant 0 : i32
    return %c0_i32, %c0_i32_0 : i32, i32
  }
  func.func @transform_8(%arg0: i32, %arg1: i32) -> (i32, i32) {
    %c0_i32 = arith.constant 0 : i32
    %c0_i32_0 = arith.constant 0 : i32
    %c0_i32_1 = arith.constant 0 : i32
    return %c0_i32, %c0_i32_0 : i32, i32
  }
  func.func @transform_9(%arg0: i32, %arg1: i32) -> (i32, i32) {
    %c0_i32 = arith.constant 0 : i32
    %c0_i32_0 = arith.constant 0 : i32
    return %arg0, %c0_i32 : i32, i32
  }
}

</mosaic_0001>

<llo_original>
// kernel: tpu_custom_call.1
$region0: #{tpu_custom_call.1}
  #allocation0 [shape = 'u32[]', space=smem, size = 0x4, offset = 0x4, fixed_abs, tag = 'smem constant byte address 0x4 - core index']
  #allocation1 [shape = 'u32[72,128]{1,0:T(1,128)}', space=vmem, size = 0x9000, scoped, tag = 'internal scratch']
  #allocation2 [shape = 'f32[16,32]{1,0:T(8,128)}', space=vmem, size = 0x2000, scoped, tag = 'scratch operand']
  #allocation3 [shape = 'f32[64,32]{1,0:T(8,128)}', space=vmem, size = 0x8000, scoped, tag = 'scratch operand']
  %s0 = inlined_call_operand.vmem [shape: bf16[8,32,32], index: 0, kind: input, shape index: {}]
  %s1 = inlined_call_operand.vmem [shape: s32[32,1], index: 1, kind: input, shape index: {}]
  %s2 = inlined_call_operand.vmem [shape: s32[8,32,1], index: 2, kind: input, shape index: {}]
  %s3 = inlined_call_operand.vmem [shape: f32[8,32,2], index: 3, kind: input, shape index: {}]
  %s4 = inlined_call_operand.vmem [shape: bf16[32,32], index: 4, kind: input, shape index: {}]
  %s5 = inlined_call_operand.vmem [shape: bf16[32,32], index: 5, kind: input, shape index: {}]
  %s6 = inlined_call_operand.vmem [shape: f32[1,32], index: 6, kind: input, shape index: {}]
  %s7 = inlined_call_operand.vmem [shape: bf16[32,128], index: 7, kind: input, shape index: {}]
  %s8 = inlined_call_operand.vmem [shape: f32[1,128], index: 8, kind: input, shape index: {}]
  %s9 = inlined_call_operand.hbm [shape: f32[16,128], index: 9, kind: output, shape index: {}]
  %s10 = sld [smem:[#allocation0]]
  $region190: #{tpu_custom_call.1} parent=0
    _
  %s12 = ssub.s32 1, %s10
  %s13 = scalar_select 0, %s12, %s10
  $region1: #{tpu_custom_call.1} parent=0
    #allocation4 [shape = 'u8[32768]{0}', space=vmem, size = 0x8000, scoped, tag = 'input window, operand 0']
    #allocation5 [shape = 'u8[65536]{0}', space=vmem, size = 0x10000, scoped, tag = 'input window, operand 2']
    #allocation6 [shape = 'u8[65536]{0}', space=vmem, size = 0x10000, scoped, tag = 'input window, operand 3']
    #allocation7 [shape = 'u8[8192]{0}', space=vmem, size = 0x2000, scoped, tag = 'output window, operand 0']
    #allocation8 [shape = 's32[2]{0}', space=sflag, size = 0x8, scoped, tag = 'scoped memory for tpu_custom_call.1']
    %14 = vsyncpa [#allocation8], 0
    %s15 = scalar_lea.sflag [#allocation8], 1
    %16 = vsyncpa %s15, 0
    loop: start=0, step=1, limit=6
    $region2: #{tpu_custom_call.1} parent=1 // loop_pre_header
      _
    $region3: #{tpu_custom_call.1} parent=1 // loop_header
      %s18 = sphi 0, %s22
      %p19 = scmp.ge.s32.totalorder %s18, 6
      %s25 = sphi 0, %s37
      %s26 = sphi 0, %s33
      %s27 = sphi 0, %s25
      %s28 = sphi 0, %s26
      %s29 = sphi 0, %s27
      %s30 = sphi 0, %s28
      %s42 = sphi 0, %s44
      %s45 = sphi 0, %s42
      %s46 = sphi 0, %s45
      %s62 = sphi 0, %s46
      %s68 = sphi 0, %s70
      %s71 = sphi 0, %s68
      %s72 = sphi 0, %s71
      %s88 = sphi 0, %s72
      %s96 = sphi 0, %s98
      %s99 = sphi 0, %s96
      %s100 = sphi 0, %s99
      %s116 = sphi 0, %s100
      %s124 = sphi 0, %s126
      %s127 = sphi 0, %s124
      %s128 = sphi 0, %s127
      %s144 = sphi 0, %s128
      %s148 = sphi 0, %s148
      %s150 = sphi 0, %s148
      %s151 = sphi 0, %s150
      %s165 = sphi 0, %s151
      %s169 = sphi 0, %s169
      %s171 = sphi 0, %s169
      %s172 = sphi 0, %s171
      %s186 = sphi 0, %s172
      %s190 = sphi 0, %s190
      %s192 = sphi 0, %s190
      %s193 = sphi 0, %s192
      %s207 = sphi 0, %s193
      %s211 = sphi 0, %s211
      %s213 = sphi 0, %s211
      %s214 = sphi 0, %s213
      %s228 = sphi 0, %s214
      %s232 = sphi 0, %s232
      %s234 = sphi 0, %s232
      %s235 = sphi 0, %s234
      %s249 = sphi 0, %s235
      %s255 = sphi 0, %s257
      %s258 = sphi 0, %s255
      %s259 = sphi 0, %s258
      %s275 = sphi 0, %s259
    $region4: #{tpu_custom_call.1} parent=1 // loop_header_branch
      %21 = sbr.rel (%p19) target = $region8
    $region5: #{tpu_custom_call.1} parent=1 // loop_body
      %s23 = ssub.s32 %s18, 1
      %s24 = ssub.s32 %s18, 2
      %s31 = sadd.s32 1, %s26
      %p32 = scmp.ge.s32.totalorder %s31, 2
      %s33 = scalar_select %p32, 0, %s31
      %s34 = sadd.s32 1, %s25
      %s35 = scalar_select %p32, %s34, %s25
      %p36 = scmp.ge.s32.totalorder %s35, 2
      %s37 = scalar_select %p36, 0, %s35
      %s38 = ssub.s32 %s26, %s33
      %s39 = ssub.s32 %s25, %s37
      %s40 = sor.u32 %s38, %s39
      %p41 = scmp.eq.s32.totalorder %s40, 0
      %s43 = sadd.s32 %s42, 1
      %s44 = scalar_select %p41, %s42, %s43
      %p47 = pneg %p41
      %p48 = scmp.eq.s32.totalorder %s18, 3
      %p49 = por %p47, %p48
      %p50 = scmp.ne.s32.totalorder %s42, %s45
      %p51 = scmp.eq.s32.totalorder %s18, 0
      %p52 = por %p50, %p51
      %p53 = scmp.ne.s32.totalorder %s42, %s45
      %p54 = scmp.eq.s32.totalorder %s23, 3
      %p55 = por %p53, %p54
      %p56 = scmp.ne.s32.totalorder %s45, %s46
      %p57 = scmp.eq.s32.totalorder %s23, 0
      %p58 = por %p56, %p57
      %p59 = scmp.ne.s32.totalorder %s45, %s46
      %p60 = scmp.eq.s32.totalorder %s24, 3
      %p61 = por %p59, %p60
      %p63 = scmp.ne.s32.totalorder %s46, %s62
      %p64 = scmp.eq.s32.totalorder %s24, 0
      %p65 = por %p63, %p64
      %s66 = ssub.s32 %s25, %s37
      %p67 = scmp.eq.s32.totalorder %s66, 0
      %s69 = sadd.s32 %s68, 1
      %s70 = scalar_select %p67, %s68, %s69
      %p73 = pneg %p67
      %p74 = scmp.eq.s32.totalorder %s18, 3
      %p75 = por %p73, %p74
      %p76 = scmp.ne.s32.totalorder %s68, %s71
      %p77 = scmp.eq.s32.totalorder %s18, 0
      %p78 = por %p76, %p77
      %p79 = scmp.ne.s32.totalorder %s68, %s71
      %p80 = scmp.eq.s32.totalorder %s23, 3
      %p81 = por %p79, %p80
      %p82 = scmp.ne.s32.totalorder %s71, %s72
      %p83 = scmp.eq.s32.totalorder %s23, 0
      %p84 = por %p82, %p83
      %p85 = scmp.ne.s32.totalorder %s71, %s72
      %p86 = scmp.eq.s32.totalorder %s24, 3
      %p87 = por %p85, %p86
      %p89 = scmp.ne.s32.totalorder %s72, %s88
      %p90 = scmp.eq.s32.totalorder %s24, 0
      %p91 = por %p89, %p90
      %s92 = ssub.s32 %s26, %s33
      %s93 = ssub.s32 %s25, %s37
      %s94 = sor.u32 %s92, %s93
      %p95 = scmp.eq.s32.totalorder %s94, 0
      %s97 = sadd.s32 %s96, 1
      %s98 = scalar_select %p95, %s96, %s97
      %p101 = pneg %p95
      %p102 = scmp.eq.s32.totalorder %s18, 3
      %p103 = por %p101, %p102
      %p104 = scmp.ne.s32.totalorder %s96, %s99
      %p105 = scmp.eq.s32.totalorder %s18, 0
      %p106 = por %p104, %p105
      %p107 = scmp.ne.s32.totalorder %s96, %s99
      %p108 = scmp.eq.s32.totalorder %s23, 3
      %p109 = por %p107, %p108
      %p110 = scmp.ne.s32.totalorder %s99, %s100
      %p111 = scmp.eq.s32.totalorder %s23, 0
      %p112 = por %p110, %p111
      %p113 = scmp.ne.s32.totalorder %s99, %s100
      %p114 = scmp.eq.s32.totalorder %s24, 3
      %p115 = por %p113, %p114
      %p117 = scmp.ne.s32.totalorder %s100, %s116
      %p118 = scmp.eq.s32.totalorder %s24, 0
      %p119 = por %p117, %p118
      %s120 = ssub.s32 %s26, %s33
      %s121 = ssub.s32 %s25, %s37
      %s122 = sor.u32 %s120, %s121
      %p123 = scmp.eq.s32.totalorder %s122, 0
      %s125 = sadd.s32 %s124, 1
      %s126 = scalar_select %p123, %s124, %s125
      %p129 = pneg %p123
      %p130 = scmp.eq.s32.totalorder %s18, 3
      %p131 = por %p129, %p130
      %p132 = scmp.ne.s32.totalorder %s124, %s127
      %p133 = scmp.eq.s32.totalorder %s18, 0
      %p134 = por %p132, %p133
      %p135 = scmp.ne.s32.totalorder %s124, %s127
      %p136 = scmp.eq.s32.totalorder %s23, 3
      %p137 = por %p135, %p136
      %p138 = scmp.ne.s32.totalorder %s127, %s128
      %p139 = scmp.eq.s32.totalorder %s23, 0
      %p140 = por %p138, %p139
      %p141 = scmp.ne.s32.totalorder %s127, %s128
      %p142 = scmp.eq.s32.totalorder %s24, 3
      %p143 = por %p141, %p142
      %p145 = scmp.ne.s32.totalorder %s128, %s144
      %p146 = scmp.eq.s32.totalorder %s24, 0
      %p147 = por %p145, %p146
      %s149 = sadd.s32 %s148, 1
      %p152 = scmp.eq.s32.totalorder %s18, 3
      %p153 = scmp.ne.s32.totalorder %s148, %s150
      %p154 = scmp.eq.s32.totalorder %s18, 0
      %p155 = por %p153, %p154
      %p156 = scmp.ne.s32.totalorder %s148, %s150
      %p157 = scmp.eq.s32.totalorder %s23, 3
      %p158 = por %p156, %p157
      %p159 = scmp.ne.s32.totalorder %s150, %s151
      %p160 = scmp.eq.s32.totalorder %s23, 0
      %p161 = por %p159, %p160
      %p162 = scmp.ne.s32.totalorder %s150, %s151
      %p163 = scmp.eq.s32.totalorder %s24, 3
      %p164 = por %p162, %p163
      %p166 = scmp.ne.s32.totalorder %s151, %s165
      %p167 = scmp.eq.s32.totalorder %s24, 0
      %p168 = por %p166, %p167
      %s170 = sadd.s32 %s169, 1
      %p173 = scmp.eq.s32.totalorder %s18, 3
      %p174 = scmp.ne.s32.totalorder %s169, %s171
      %p175 = scmp.eq.s32.totalorder %s18, 0
      %p176 = por %p174, %p175
      %p177 = scmp.ne.s32.totalorder %s169, %s171
      %p178 = scmp.eq.s32.totalorder %s23, 3
      %p179 = por %p177, %p178
      %p180 = scmp.ne.s32.totalorder %s171, %s172
      %p181 = scmp.eq.s32.totalorder %s23, 0
      %p182 = por %p180, %p181
      %p183 = scmp.ne.s32.totalorder %s171, %s172
      %p184 = scmp.eq.s32.totalorder %s24, 3
      %p185 = por %p183, %p184
      %p187 = scmp.ne.s32.totalorder %s172, %s186
      %p188 = scmp.eq.s32.totalorder %s24, 0
      %p189 = por %p187, %p188
      %s191 = sadd.s32 %s190, 1
      %p194 = scmp.eq.s32.totalorder %s18, 3
      %p195 = scmp.ne.s32.totalorder %s190, %s192
      %p196 = scmp.eq.s32.totalorder %s18, 0
      %p197 = por %p195, %p196
      %p198 = scmp.ne.s32.totalorder %s190, %s192
      %p199 = scmp.eq.s32.totalorder %s23, 3
      %p200 = por %p198, %p199
      %p201 = scmp.ne.s32.totalorder %s192, %s193
      %p202 = scmp.eq.s32.totalorder %s23, 0
      %p203 = por %p201, %p202
      %p204 = scmp.ne.s32.totalorder %s192, %s193
      %p205 = scmp.eq.s32.totalorder %s24, 3
      %p206 = por %p204, %p205
      %p208 = scmp.ne.s32.totalorder %s193, %s207
      %p209 = scmp.eq.s32.totalorder %s24, 0
      %p210 = por %p208, %p209
      %s212 = sadd.s32 %s211, 1
      %p215 = scmp.eq.s32.totalorder %s18, 3
      %p216 = scmp.ne.s32.totalorder %s211, %s213
      %p217 = scmp.eq.s32.totalorder %s18, 0
      %p218 = por %p216, %p217
      %p219 = scmp.ne.s32.totalorder %s211, %s213
      %p220 = scmp.eq.s32.totalorder %s23, 3
      %p221 = por %p219, %p220
      %p222 = scmp.ne.s32.totalorder %s213, %s214
      %p223 = scmp.eq.s32.totalorder %s23, 0
      %p224 = por %p222, %p223
      %p225 = scmp.ne.s32.totalorder %s213, %s214
      %p226 = scmp.eq.s32.totalorder %s24, 3
      %p227 = por %p225, %p226
      %p229 = scmp.ne.s32.totalorder %s214, %s228
      %p230 = scmp.eq.s32.totalorder %s24, 0
      %p231 = por %p229, %p230
      %s233 = sadd.s32 %s232, 1
      %p236 = scmp.eq.s32.totalorder %s18, 3
      %p237 = scmp.ne.s32.totalorder %s232, %s234
      %p238 = scmp.eq.s32.totalorder %s18, 0
      %p239 = por %p237, %p238
      %p240 = scmp.ne.s32.totalorder %s232, %s234
      %p241 = scmp.eq.s32.totalorder %s23, 3
      %p242 = por %p240, %p241
      %p243 = scmp.ne.s32.totalorder %s234, %s235
      %p244 = scmp.eq.s32.totalorder %s23, 0
      %p245 = por %p243, %p244
      %p246 = scmp.ne.s32.totalorder %s234, %s235
      %p247 = scmp.eq.s32.totalorder %s24, 3
      %p248 = por %p246, %p247
      %p250 = scmp.ne.s32.totalorder %s235, %s249
      %p251 = scmp.eq.s32.totalorder %s24, 0
      %p252 = por %p250, %p251
      %s253 = ssub.s32 %s25, %s37
      %p254 = scmp.eq.s32.totalorder %s253, 0
      %s256 = sadd.s32 %s255, 1
      %s257 = scalar_select %p254, %s255, %s256
      %p260 = pneg %p254
      %p261 = scmp.eq.s32.totalorder %s18, 3
      %p262 = por %p260, %p261
      %p263 = scmp.ne.s32.totalorder %s255, %s258
      %p264 = scmp.eq.s32.totalorder %s18, 0
      %p265 = por %p263, %p264
      %p266 = scmp.ne.s32.totalorder %s255, %s258
      %p267 = scmp.eq.s32.totalorder %s23, 3
      %p268 = por %p266, %p267
      %p269 = scmp.ne.s32.totalorder %s258, %s259
      %p270 = scmp.eq.s32.totalorder %s23, 0
      %p271 = por %p269, %p270
      %p272 = scmp.ne.s32.totalorder %s258, %s259
      %p273 = scmp.eq.s32.totalorder %s24, 3
      %p274 = por %p272, %p273
      %p276 = scmp.ne.s32.totalorder %s259, %s275
      %p277 = scmp.eq.s32.totalorder %s24, 0
      %p278 = por %p276, %p277
      %p279 = scmp.le.s32.totalorder 1, %s18
      %p280 = scmp.lt.s32.totalorder %s18, 5
      %p281 = pnand %p279, %p280
      %p282 = pneg %p281
      // Predicated region
      $region9: #{tpu_custom_call.1} parent=5 // pred_check
        _
      $region10: #{tpu_custom_call.1} parent=5 // pred_check_branch
        %284 = sbr.rel (%p281) target = $region12
      $region11: #{tpu_custom_call.1} parent=5 // pred_region
        %s285 = ssub.s32 %s18, 1
        // Predicated region
        $region13: #{tpu_custom_call.1} parent=11 // pred_check
          %p286 = pneg %p161
        $region14: #{tpu_custom_call.1} parent=11 // pred_check_branch
          %288 = sbr.rel (%p286) target = $region16
        $region15: #{tpu_custom_call.1} parent=11 // pred_region
          _
        $region16: #{tpu_custom_call.1} parent=11 // pred_fallthru
          _
        // Predicated region
        $region17: #{tpu_custom_call.1} parent=11 // pred_check
          %p289 = pneg %p182
        $region18: #{tpu_custom_call.1} parent=11 // pred_check_branch
          %291 = sbr.rel (%p289) target = $region20
        $region19: #{tpu_custom_call.1} parent=11 // pred_region
          _
        $region20: #{tpu_custom_call.1} parent=11 // pred_fallthru
          _
        // Predicated region
        $region21: #{tpu_custom_call.1} parent=11 // pred_check
          %p292 = pneg %p203
        $region22: #{tpu_custom_call.1} parent=11 // pred_check_branch
          %294 = sbr.rel (%p292) target = $region24
        $region23: #{tpu_custom_call.1} parent=11 // pred_region
          _
        $region24: #{tpu_custom_call.1} parent=11 // pred_fallthru
          _
        // Predicated region
        $region25: #{tpu_custom_call.1} parent=11 // pred_check
          %p295 = pneg %p224
        $region26: #{tpu_custom_call.1} parent=11 // pred_check_branch
          %297 = sbr.rel (%p295) target = $region28
        $region27: #{tpu_custom_call.1} parent=11 // pred_region
          _
        $region28: #{tpu_custom_call.1} parent=11 // pred_fallthru
          _
        // Predicated region
        $region29: #{tpu_custom_call.1} parent=11 // pred_check
          %p298 = pneg %p245
        $region30: #{tpu_custom_call.1} parent=11 // pred_check_branch
          %300 = sbr.rel (%p298) target = $region32
        $region31: #{tpu_custom_call.1} parent=11 // pred_region
          _
        $region32: #{tpu_custom_call.1} parent=11 // pred_fallthru
          _
      $region12: #{tpu_custom_call.1} parent=5 // pred_fallthru
        _
      %p301 = scmp.lt.s32.totalorder %s18, 4
      // Predicated region
      $region33: #{tpu_custom_call.1} parent=5 // pred_check
        %p302 = pneg %p301
      $region34: #{tpu_custom_call.1} parent=5 // pred_check_branch
        %304 = sbr.rel (%p302) target = $region36
      $region35: #{tpu_custom_call.1} parent=5 // pred_region
        // Predicated region
        $region37: #{tpu_custom_call.1} parent=35 // pred_check
          %p305 = pneg %p52
        $region38: #{tpu_custom_call.1} parent=35 // pred_check_branch
          %307 = sbr.rel (%p305) target = $region40
        $region39: #{tpu_custom_call.1} parent=35 // pred_region
          %s308 = sand.u32 %s42, 1
          %s309 = sand.u32 %s42, 1
          %s310 = smul.addr %s309, 32
          %s311 = scalar_lea.vmem [#allocation4], %s310
          %s312 = smul.u32 4, %s26
          %s313 = smul.u32 2, %s25
          %s314 = smul.addr %s312, 4
          %s315 = sadd.s32 %s313, %s314
          %s316 = smul.addr %s315, 4
          %s317 = scalar_lea.vmem %s0, %s316
          // Predicated region
          $region41: #{tpu_custom_call.1} parent=39 // pred_check
            _
          $region42: #{tpu_custom_call.1} parent=39 // pred_check_branch
            %319 = sbr.rel (0) target = $region44
          $region43: #{tpu_custom_call.1} parent=39 // pred_region
            // Predicated region
            $region45: #{tpu_custom_call.1} parent=43 // pred_check
              _
            $region46: #{tpu_custom_call.1} parent=43 // pred_check_branch
              %321 = sbr.rel target = $region48
            $region47: #{tpu_custom_call.1} parent=43 // pred_region
              // Predicated region
              $region60: #{tpu_custom_call.1} parent=47 // pred_check
                _
              $region61: #{tpu_custom_call.1} parent=47 // pred_check_branch
                %351 = sbr.rel (0) target = $region63
              $region62: #{tpu_custom_call.1} parent=47 // pred_region
                loop: start=0, step=1, limit=1
                $region64: #{tpu_custom_call.1} parent=62 // loop_pre_header
                  _
                $region65: #{tpu_custom_call.1} parent=62 // loop_header
                  %s353 = sphi 0, %s357
                  %p354 = scmp.ge.s32.totalorder %s353, 1
                  %s358 = sphi %s317, %s317
                  %s359 = sphi %s311, %s311
                $region66: #{tpu_custom_call.1} parent=62 // loop_header_branch
                  %356 = sbr.rel (%p354) target = $region70
                $region67: #{tpu_custom_call.1} parent=62 // loop_body
                  _
                $region68: #{tpu_custom_call.1} parent=62 // loop_footer
                  %s357 = sadd.s32 1, %s353
                $region69: #{tpu_custom_call.1} parent=62 // loop_footer_branch
                  %352 = sbr.rel target = $region65
                $region70: #{tpu_custom_call.1} parent=62 // loop_exit
                  _
                %s361 = ssub.s32 16, 1
                loop: start=0, step=1, limit=1
                $region71: #{tpu_custom_call.1} parent=62 // loop_pre_header
                  _
                $region72: #{tpu_custom_call.1} parent=62 // loop_header
                  %s363 = sphi 0, %s367
                  %p364 = scmp.ge.s32.totalorder %s363, 1
                  %s368 = sphi %s317, %s317
                  %s369 = sphi %s311, %s311
                $region73: #{tpu_custom_call.1} parent=62 // loop_header_branch
                  %366 = sbr.rel (%p364) target = $region77
                $region74: #{tpu_custom_call.1} parent=62 // loop_body
                  %v370 = vld [vmem:[%s368] sm:%s361]
                  %371 = vst [vmem:[%s369] sm:%s361] %v370
                  %v372 = vld [vmem:[%s368 + $0x4] sm:%s361]
                  %373 = vst [vmem:[%s369 + $0x4] sm:%s361] %v372
                  %v374 = vld [vmem:[%s368 + $0x10] sm:%s361]
                  %375 = vst [vmem:[%s369 + $0x8] sm:%s361] %v374
                  %v376 = vld [vmem:[%s368 + $0x14] sm:%s361]
                  %377 = vst [vmem:[%s369 + $0xc] sm:%s361] %v376
                  %v378 = vld [vmem:[%s368 + $0x20] sm:%s361]
                  %379 = vst [vmem:[%s369 + $0x10] sm:%s361] %v378
                  %v380 = vld [vmem:[%s368 + $0x24] sm:%s361]
                  %381 = vst [vmem:[%s369 + $0x14] sm:%s361] %v380
                  %v382 = vld [vmem:[%s368 + $0x30] sm:%s361]
                  %383 = vst [vmem:[%s369 + $0x18] sm:%s361] %v382
                  %v384 = vld [vmem:[%s368 + $0x34] sm:%s361]
                  %385 = vst [vmem:[%s369 + $0x1c] sm:%s361] %v384
                $region75: #{tpu_custom_call.1} parent=62 // loop_footer
                  %s367 = sadd.s32 1, %s363
                $region76: #{tpu_custom_call.1} parent=62 // loop_footer_branch
                  %362 = sbr.rel target = $region72
                $region77: #{tpu_custom_call.1} parent=62 // loop_exit
                  _
              $region63: #{tpu_custom_call.1} parent=47 // pred_fallthru
                _
            $region48: #{tpu_custom_call.1} parent=43 // pred_fallthru
              _
            // Predicated region
            $region49: #{tpu_custom_call.1} parent=43 // pred_check
              _
            $region50: #{tpu_custom_call.1} parent=43 // pred_check_branch
              %323 = sbr.rel (0) target = $region52
            $region51: #{tpu_custom_call.1} parent=43 // pred_region
              %s325 = ssub.s32 16, 1
              loop: start=0, step=1, limit=1
              $region53: #{tpu_custom_call.1} parent=51 // loop_pre_header
                _
              $region54: #{tpu_custom_call.1} parent=51 // loop_header
                %s327 = sphi 0, %s331
                %p328 = scmp.ge.s32.totalorder %s327, 1
                %s332 = sphi %s317, %s317
                %s333 = sphi %s311, %s311
              $region55: #{tpu_custom_call.1} parent=51 // loop_header_branch
                %330 = sbr.rel (%p328) target = $region59
              $region56: #{tpu_custom_call.1} parent=51 // loop_body
                %v334 = vld [vmem:[%s332] sm:%s325]
                %335 = vst [vmem:[%s333] sm:%s325] %v334
                %v336 = vld [vmem:[%s332 + $0x4] sm:%s325]
                %337 = vst [vmem:[%s333 + $0x4] sm:%s325] %v336
                %v338 = vld [vmem:[%s332 + $0x10] sm:%s325]
                %339 = vst [vmem:[%s333 + $0x8] sm:%s325] %v338
                %v340 = vld [vmem:[%s332 + $0x14] sm:%s325]
                %341 = vst [vmem:[%s333 + $0xc] sm:%s325] %v340
                %v342 = vld [vmem:[%s332 + $0x20] sm:%s325]
                %343 = vst [vmem:[%s333 + $0x10] sm:%s325] %v342
                %v344 = vld [vmem:[%s332 + $0x24] sm:%s325]
                %345 = vst [vmem:[%s333 + $0x14] sm:%s325] %v344
                %v346 = vld [vmem:[%s332 + $0x30] sm:%s325]
                %347 = vst [vmem:[%s333 + $0x18] sm:%s325] %v346
                %v348 = vld [vmem:[%s332 + $0x34] sm:%s325]
                %349 = vst [vmem:[%s333 + $0x1c] sm:%s325] %v348
              $region57: #{tpu_custom_call.1} parent=51 // loop_footer
                %s331 = sadd.s32 1, %s327
              $region58: #{tpu_custom_call.1} parent=51 // loop_footer_branch
                %326 = sbr.rel target = $region54
              $region59: #{tpu_custom_call.1} parent=51 // loop_exit
                _
            $region52: #{tpu_custom_call.1} parent=43 // pred_fallthru
              _
          $region44: #{tpu_custom_call.1} parent=39 // pred_fallthru
            _
          %386 = vnop
        $region40: #{tpu_custom_call.1} parent=35 // pred_fallthru
          _
        // Predicated region
        $region78: #{tpu_custom_call.1} parent=35 // pred_check
          %p387 = pneg %p78
        $region79: #{tpu_custom_call.1} parent=35 // pred_check_branch
          %389 = sbr.rel (%p387) target = $region81
        $region80: #{tpu_custom_call.1} parent=35 // pred_region
          %s390 = smul.u32 2, %s25
          %p391 = scmp.lt.s32.totalorder %s390, 3
          %s392 = scalar_select %p391, %s390, 3
          %s393 = smul.addr %s392, 8
          %s394 = scalar_lea.vmem %s1, %s393
          %s395 = smul.u32 2, %s25
        $region81: #{tpu_custom_call.1} parent=35 // pred_fallthru
          _
        // Predicated region
        $region82: #{tpu_custom_call.1} parent=35 // pred_check
          %p396 = pneg %p106
        $region83: #{tpu_custom_call.1} parent=35 // pred_check_branch
          %398 = sbr.rel (%p396) target = $region85
        $region84: #{tpu_custom_call.1} parent=35 // pred_region
          %s399 = sand.u32 %s96, 1
          %s400 = sand.u32 %s96, 1
          %s401 = smul.addr %s400, 64
          %s402 = scalar_lea.vmem [#allocation5], %s401
          %s403 = smul.u32 4, %s26
          %s404 = smul.u32 2, %s25
          %s405 = smul.addr %s403, 4
          %s406 = sadd.s32 %s404, %s405
          %s407 = smul.addr %s406, 8
          %s408 = scalar_lea.vmem %s2, %s407
          // Predicated region
          $region86: #{tpu_custom_call.1} parent=84 // pred_check
            _
          $region87: #{tpu_custom_call.1} parent=84 // pred_check_branch
            %410 = sbr.rel (0) target = $region89
          $region88: #{tpu_custom_call.1} parent=84 // pred_region
            // Predicated region
            $region90: #{tpu_custom_call.1} parent=88 // pred_check
              _
            $region91: #{tpu_custom_call.1} parent=88 // pred_check_branch
              %412 = sbr.rel (0) target = $region93
            $region92: #{tpu_custom_call.1} parent=88 // pred_region
              // Predicated region
              $region105: #{tpu_custom_call.1} parent=92 // pred_check
                _
              $region106: #{tpu_custom_call.1} parent=92 // pred_check_branch
                %442 = sbr.rel (0) target = $region108
              $region107: #{tpu_custom_call.1} parent=92 // pred_region
                loop: start=0, step=1, limit=1
                $region109: #{tpu_custom_call.1} parent=107 // loop_pre_header
                  _
                $region110: #{tpu_custom_call.1} parent=107 // loop_header
                  %s444 = sphi 0, %s448
                  %p445 = scmp.ge.s32.totalorder %s444, 1
                  %s449 = sphi %s408, %s408
                  %s450 = sphi %s402, %s402
                $region111: #{tpu_custom_call.1} parent=107 // loop_header_branch
                  %447 = sbr.rel (%p445) target = $region115
                $region112: #{tpu_custom_call.1} parent=107 // loop_body
                  %v451 = vld [vmem:[%s449] sm:$0xff]
                  %452 = vst [vmem:[%s450] sm:$0xff] %v451
                  %v453 = vld [vmem:[%s449 + $0x8] sm:$0xff]
                  %454 = vst [vmem:[%s450 + $0x8] sm:$0xff] %v453
                  %v455 = vld [vmem:[%s449 + $0x20] sm:$0xff]
                  %456 = vst [vmem:[%s450 + $0x10] sm:$0xff] %v455
                  %v457 = vld [vmem:[%s449 + $0x28] sm:$0xff]
                  %458 = vst [vmem:[%s450 + $0x18] sm:$0xff] %v457
                  %v459 = vld [vmem:[%s449 + $0x40] sm:$0xff]
                  %460 = vst [vmem:[%s450 + $0x20] sm:$0xff] %v459
                  %v461 = vld [vmem:[%s449 + $0x48] sm:$0xff]
                  %462 = vst [vmem:[%s450 + $0x28] sm:$0xff] %v461
                  %v463 = vld [vmem:[%s449 + $0x60] sm:$0xff]
                  %464 = vst [vmem:[%s450 + $0x30] sm:$0xff] %v463
                  %v465 = vld [vmem:[%s449 + $0x68] sm:$0xff]
                  %466 = vst [vmem:[%s450 + $0x38] sm:$0xff] %v465
                $region113: #{tpu_custom_call.1} parent=107 // loop_footer
                  %s448 = sadd.s32 1, %s444
                $region114: #{tpu_custom_call.1} parent=107 // loop_footer_branch
                  %443 = sbr.rel target = $region110
                $region115: #{tpu_custom_call.1} parent=107 // loop_exit
                  _
              $region108: #{tpu_custom_call.1} parent=92 // pred_fallthru
                _
              // Predicated region
              $region116: #{tpu_custom_call.1} parent=92 // pred_check
                _
              $region117: #{tpu_custom_call.1} parent=92 // pred_check_branch
                %468 = sbr.rel target = $region119
              $region118: #{tpu_custom_call.1} parent=92 // pred_region
                _
              $region119: #{tpu_custom_call.1} parent=92 // pred_fallthru
                _
            $region93: #{tpu_custom_call.1} parent=88 // pred_fallthru
              _
            // Predicated region
            $region94: #{tpu_custom_call.1} parent=88 // pred_check
              _
            $region95: #{tpu_custom_call.1} parent=88 // pred_check_branch
              %414 = sbr.rel target = $region97
            $region96: #{tpu_custom_call.1} parent=88 // pred_region
              %s416 = ssub.s32 256, 1
              loop: start=0, step=1, limit=1
              $region98: #{tpu_custom_call.1} parent=96 // loop_pre_header
                _
              $region99: #{tpu_custom_call.1} parent=96 // loop_header
                %s418 = sphi 0, %s422
                %p419 = scmp.ge.s32.totalorder %s418, 1
                %s423 = sphi %s408, %s408
                %s424 = sphi %s402, %s402
              $region100: #{tpu_custom_call.1} parent=96 // loop_header_branch
                %421 = sbr.rel (%p419) target = $region104
              $region101: #{tpu_custom_call.1} parent=96 // loop_body
                %v425 = vld [vmem:[%s423] sm:%s416]
                %426 = vst [vmem:[%s424] sm:%s416] %v425
                %v427 = vld [vmem:[%s423 + $0x8] sm:%s416]
                %428 = vst [vmem:[%s424 + $0x8] sm:%s416] %v427
                %v429 = vld [vmem:[%s423 + $0x20] sm:%s416]
                %430 = vst [vmem:[%s424 + $0x10] sm:%s416] %v429
                %v431 = vld [vmem:[%s423 + $0x28] sm:%s416]
                %432 = vst [vmem:[%s424 + $0x18] sm:%s416] %v431
                %v433 = vld [vmem:[%s423 + $0x40] sm:%s416]
                %434 = vst [vmem:[%s424 + $0x20] sm:%s416] %v433
                %v435 = vld [vmem:[%s423 + $0x48] sm:%s416]
                %436 = vst [vmem:[%s424 + $0x28] sm:%s416] %v435
                %v437 = vld [vmem:[%s423 + $0x60] sm:%s416]
                %438 = vst [vmem:[%s424 + $0x30] sm:%s416] %v437
                %v439 = vld [vmem:[%s423 + $0x68] sm:%s416]
                %440 = vst [vmem:[%s424 + $0x38] sm:%s416] %v439
              $region102: #{tpu_custom_call.1} parent=96 // loop_footer
                %s422 = sadd.s32 1, %s418
              $region103: #{tpu_custom_call.1} parent=96 // loop_footer_branch
                %417 = sbr.rel target = $region99
              $region104: #{tpu_custom_call.1} parent=96 // loop_exit
                _
            $region97: #{tpu_custom_call.1} parent=88 // pred_fallthru
              _
          $region89: #{tpu_custom_call.1} parent=84 // pred_fallthru
            _
          %469 = vnop
        $region85: #{tpu_custom_call.1} parent=35 // pred_fallthru
          _
        // Predicated region
        $region120: #{tpu_custom_call.1} parent=35 // pred_check
          %p470 = pneg %p134
        $region121: #{tpu_custom_call.1} parent=35 // pred_check_branch
          %472 = sbr.rel (%p470) target = $region123
        $region122: #{tpu_custom_call.1} parent=35 // pred_region
          %s473 = sand.u32 %s124, 1
          %s474 = sand.u32 %s124, 1
          %s475 = smul.addr %s474, 64
          %s476 = scalar_lea.vmem [#allocation6], %s475
          %s477 = smul.u32 4, %s26
          %s478 = smul.u32 2, %s25
          %s479 = smul.addr %s477, 4
          %s480 = sadd.s32 %s478, %s479
          %s481 = smul.addr %s480, 8
          %s482 = scalar_lea.vmem %s3, %s481
          // Predicated region
          $region124: #{tpu_custom_call.1} parent=122 // pred_check
            _
          $region125: #{tpu_custom_call.1} parent=122 // pred_check_branch
            %484 = sbr.rel (0) target = $region127
          $region126: #{tpu_custom_call.1} parent=122 // pred_region
            // Predicated region
            $region128: #{tpu_custom_call.1} parent=126 // pred_check
              _
            $region129: #{tpu_custom_call.1} parent=126 // pred_check_branch
              %486 = sbr.rel (0) target = $region131
            $region130: #{tpu_custom_call.1} parent=126 // pred_region
              // Predicated region
              $region143: #{tpu_custom_call.1} parent=130 // pred_check
                _
              $region144: #{tpu_custom_call.1} parent=130 // pred_check_branch
                %516 = sbr.rel (0) target = $region146
              $region145: #{tpu_custom_call.1} parent=130 // pred_region
                loop: start=0, step=1, limit=1
                $region147: #{tpu_custom_call.1} parent=145 // loop_pre_header
                  _
                $region148: #{tpu_custom_call.1} parent=145 // loop_header
                  %s518 = sphi 0, %s522
                  %p519 = scmp.ge.s32.totalorder %s518, 1
                  %s523 = sphi %s482, %s482
                  %s524 = sphi %s476, %s476
                $region149: #{tpu_custom_call.1} parent=145 // loop_header_branch
                  %521 = sbr.rel (%p519) target = $region153
                $region150: #{tpu_custom_call.1} parent=145 // loop_body
                  %v525 = vld [vmem:[%s523] sm:$0xff]
                  %526 = vst [vmem:[%s524] sm:$0xff] %v525
                  %v527 = vld [vmem:[%s523 + $0x8] sm:$0xff]
                  %528 = vst [vmem:[%s524 + $0x8] sm:$0xff] %v527
                  %v529 = vld [vmem:[%s523 + $0x20] sm:$0xff]
                  %530 = vst [vmem:[%s524 + $0x10] sm:$0xff] %v529
                  %v531 = vld [vmem:[%s523 + $0x28] sm:$0xff]
                  %532 = vst [vmem:[%s524 + $0x18] sm:$0xff] %v531
                  %v533 = vld [vmem:[%s523 + $0x40] sm:$0xff]
                  %534 = vst [vmem:[%s524 + $0x20] sm:$0xff] %v533
                  %v535 = vld [vmem:[%s523 + $0x48] sm:$0xff]
                  %536 = vst [vmem:[%s524 + $0x28] sm:$0xff] %v535
                  %v537 = vld [vmem:[%s523 + $0x60] sm:$0xff]
                  %538 = vst [vmem:[%s524 + $0x30] sm:$0xff] %v537
                  %v539 = vld [vmem:[%s523 + $0x68] sm:$0xff]
                  %540 = vst [vmem:[%s524 + $0x38] sm:$0xff] %v539
                $region151: #{tpu_custom_call.1} parent=145 // loop_footer
                  %s522 = sadd.s32 1, %s518
                $region152: #{tpu_custom_call.1} parent=145 // loop_footer_branch
                  %517 = sbr.rel target = $region148
                $region153: #{tpu_custom_call.1} parent=145 // loop_exit
                  _
              $region146: #{tpu_custom_call.1} parent=130 // pred_fallthru
                _
              // Predicated region
              $region154: #{tpu_custom_call.1} parent=130 // pred_check
                _
              $region155: #{tpu_custom_call.1} parent=130 // pred_check_branch
                %542 = sbr.rel target = $region157
              $region156: #{tpu_custom_call.1} parent=130 // pred_region
                _
              $region157: #{tpu_custom_call.1} parent=130 // pred_fallthru
                _
            $region131: #{tpu_custom_call.1} parent=126 // pred_fallthru
              _
            // Predicated region
            $region132: #{tpu_custom_call.1} parent=126 // pred_check
              _
            $region133: #{tpu_custom_call.1} parent=126 // pred_check_branch
              %488 = sbr.rel target = $region135
            $region134: #{tpu_custom_call.1} parent=126 // pred_region
              %s490 = ssub.s32 256, 1
              loop: start=0, step=1, limit=1
              $region136: #{tpu_custom_call.1} parent=134 // loop_pre_header
                _
              $region137: #{tpu_custom_call.1} parent=134 // loop_header
                %s492 = sphi 0, %s496
                %p493 = scmp.ge.s32.totalorder %s492, 1
                %s497 = sphi %s482, %s482
                %s498 = sphi %s476, %s476
              $region138: #{tpu_custom_call.1} parent=134 // loop_header_branch
                %495 = sbr.rel (%p493) target = $region142
              $region139: #{tpu_custom_call.1} parent=134 // loop_body
                %v499 = vld [vmem:[%s497] sm:%s490]
                %500 = vst [vmem:[%s498] sm:%s490] %v499
                %v501 = vld [vmem:[%s497 + $0x8] sm:%s490]
                %502 = vst [vmem:[%s498 + $0x8] sm:%s490] %v501
                %v503 = vld [vmem:[%s497 + $0x20] sm:%s490]
                %504 = vst [vmem:[%s498 + $0x10] sm:%s490] %v503
                %v505 = vld [vmem:[%s497 + $0x28] sm:%s490]
                %506 = vst [vmem:[%s498 + $0x18] sm:%s490] %v505
                %v507 = vld [vmem:[%s497 + $0x40] sm:%s490]
                %508 = vst [vmem:[%s498 + $0x20] sm:%s490] %v507
                %v509 = vld [vmem:[%s497 + $0x48] sm:%s490]
                %510 = vst [vmem:[%s498 + $0x28] sm:%s490] %v509
                %v511 = vld [vmem:[%s497 + $0x60] sm:%s490]
                %512 = vst [vmem:[%s498 + $0x30] sm:%s490] %v511
                %v513 = vld [vmem:[%s497 + $0x68] sm:%s490]
                %514 = vst [vmem:[%s498 + $0x38] sm:%s490] %v513
              $region140: #{tpu_custom_call.1} parent=134 // loop_footer
                %s496 = sadd.s32 1, %s492
              $region141: #{tpu_custom_call.1} parent=134 // loop_footer_branch
                %491 = sbr.rel target = $region137
              $region142: #{tpu_custom_call.1} parent=134 // loop_exit
                _
            $region135: #{tpu_custom_call.1} parent=126 // pred_fallthru
              _
          $region127: #{tpu_custom_call.1} parent=122 // pred_fallthru
            _
          %543 = vnop
        $region123: #{tpu_custom_call.1} parent=35 // pred_fallthru
          _
      $region36: #{tpu_custom_call.1} parent=5 // pred_fallthru
        _
      %p544 = scmp.le.s32.totalorder 1, %s18
      %p545 = scmp.lt.s32.totalorder %s18, 5
      %p546 = pnand %p544, %p545
      %p547 = pneg %p546
      // Predicated region
      $region158: #{tpu_custom_call.1} parent=5 // pred_check
        _
      $region159: #{tpu_custom_call.1} parent=5 // pred_check_branch
        %549 = sbr.rel (%p546) target = $region161
      $region160: #{tpu_custom_call.1} parent=5 // pred_region
        %s550 = ssub.s32 %s18, 1
        %s551 = sand.u32 %s45, 1
        %s552 = sand.u32 %s45, 1
        %s553 = smul.addr %s552, 32
        %s554 = scalar_lea.vmem [#allocation4], %s553
        // Predicated region
        $region162: #{tpu_custom_call.1} parent=160 // pred_check
          %p555 = pneg %p58
        $region163: #{tpu_custom_call.1} parent=160 // pred_check_branch
          %557 = sbr.rel (%p555) target = $region165
        $region164: #{tpu_custom_call.1} parent=160 // pred_region
          _
        $region165: #{tpu_custom_call.1} parent=160 // pred_fallthru
          _
        %s558 = sand.u32 %s99, 1
        %s559 = sand.u32 %s99, 1
        %s560 = smul.addr %s559, 64
        %s561 = scalar_lea.vmem [#allocation5], %s560
        // Predicated region
        $region166: #{tpu_custom_call.1} parent=160 // pred_check
          %p562 = pneg %p112
        $region167: #{tpu_custom_call.1} parent=160 // pred_check_branch
          %564 = sbr.rel (%p562) target = $region169
        $region168: #{tpu_custom_call.1} parent=160 // pred_region
          _
        $region169: #{tpu_custom_call.1} parent=160 // pred_fallthru
          _
        %s565 = sand.u32 %s127, 1
        %s566 = sand.u32 %s127, 1
        %s567 = smul.addr %s566, 64
        %s568 = scalar_lea.vmem [#allocation6], %s567
        // Predicated region
        $region170: #{tpu_custom_call.1} parent=160 // pred_check
          %p569 = pneg %p140
        $region171: #{tpu_custom_call.1} parent=160 // pred_check_branch
          %571 = sbr.rel (%p569) target = $region173
        $region172: #{tpu_custom_call.1} parent=160 // pred_region
          _
        $region173: #{tpu_custom_call.1} parent=160 // pred_fallthru
          _
        %s572 = sand.u32 %s45, 1
        %s573 = sand.u32 %s45, 1
        %s574 = smul.addr %s573, 32
        %s575 = scalar_lea.vmem [#allocation4], %s574
        %p576 = pneg %p58
        %p577 = pneg %p55
        %s578 = smul.u32 2, %s27
        %p579 = scmp.lt.s32.totalorder %s578, 3
        %s580 = scalar_select %p579, %s578, 3
        %s581 = smul.addr %s580, 8
        %s582 = scalar_lea.vmem %s1, %s581
        %p583 = pneg %p84
        %p584 = pneg %p81
        %s585 = sand.u32 %s99, 1
        %s586 = sand.u32 %s99, 1
        %s587 = smul.addr %s586, 64
        %s588 = scalar_lea.vmem [#allocation5], %s587
        %p589 = pneg %p112
        %p590 = pneg %p109
        %s591 = sand.u32 %s127, 1
        %s592 = sand.u32 %s127, 1
        %s593 = smul.addr %s592, 64
        %s594 = scalar_lea.vmem [#allocation6], %s593
        %p595 = pneg %p140
        %p596 = pneg %p137
        %p597 = pneg %p161
        %p598 = pneg %p158
        %p599 = pneg %p182
        %p600 = pneg %p179
        %p601 = pneg %p203
        %p602 = pneg %p200
        %p603 = pneg %p224
        %p604 = pneg %p221
        %p605 = pneg %p245
        %p606 = pneg %p242
        %p607 = pneg %p271
        %p608 = pneg %p268
        %s609 = sand.u32 %s258, 1
        %s610 = scalar_lea.sflag [#allocation8], %s609
        %s611 = sand.u32 %s258, 1
        %s612 = smul.addr %s611, 8
        %s613 = scalar_lea.vmem [#allocation7], %s612
        %s614 = smul.u32 4, %s28
        %s615 = smul.u32 2, %s27
        %s616 = smul.u32 2, %s27
        %p617 = scmp.lt.s32.totalorder %s616, 3
        %s618 = scalar_select %p617, %s616, 3
        %s619 = smul.addr %s618, 8
        %s620 = scalar_lea.vmem %s1, %s619
        %s621 = smul.u32 2, %s27
        %s622 = smul.u32 4, %s28
        %s623 = smul.u32 2, %s27
        %s624 = smul.u32 4, %s28
        %s625 = smul.u32 2, %s27
        %p627 = scmp.eq.s32.totalorder %s28, 0
        // Predicated region
        $region174: #{tpu_custom_call.1} parent=160 // pred_check
          %p628 = pneg %p627
        $region175: #{tpu_custom_call.1} parent=160 // pred_check_branch
          %630 = sbr.rel (%p628) target = $region177
        $region176: #{tpu_custom_call.1} parent=160 // pred_region
          %vm631 = vcmask 261120
          %632 = vst.msk [vmem:[#allocation2] sm:$0xff] %vm631, 0.0
          %633 = vst.msk [vmem:[#allocation2 + $0x8] sm:$0xff] %vm631, 0.0
          %634 = vst [vmem:[%s613] sm:$0xff] 0.0
        $region177: #{tpu_custom_call.1} parent=160 // pred_fallthru
          _
        %v635 = vld [vmem:[%s620] sm:$0xff]
        %v636 = vld [vmem:[%s620 + $0x8] sm:$0xff]
        %v637 = vld [vmem:[%s5] sm:$0xf]
        %v638 = vld [vmem:[%s5 + $0x4] sm:$0xf]
        %v639 = vld [vmem:[%s5 + $0x8] sm:$0xf]
        %v640 = vld [vmem:[%s5 + $0xc] sm:$0xf]
        %v641 = vld [vmem:[%s554] sm:$0xf]
        %v642 = vld [vmem:[%s554 + $0x4] sm:$0xf]
        %v643 = vld [vmem:[%s554 + $0x8] sm:$0xf]
        %v644 = vld [vmem:[%s554 + $0xc] sm:$0xf]
        %v645 = vld [vmem:[%s554 + $0x10] sm:$0xf]
        %v646 = vld [vmem:[%s554 + $0x14] sm:$0xf]
        %v647 = vld [vmem:[%s554 + $0x18] sm:$0xf]
        %v648 = vld [vmem:[%s554 + $0x1c] sm:$0xf]
        %v649 = vld [vmem:[%s4] sm:$0xf]
        %v650 = vld [vmem:[%s4 + $0x4] sm:$0xf]
        %v651 = vld [vmem:[%s4 + $0x8] sm:$0xf]
        %v652 = vld [vmem:[%s4 + $0xc] sm:$0xf]
        %v653 = vld [vmem:[%s6] sm:$0x1]
        %v655 = vperm.slane %v653, 0
        %v665 = vunpack.c.l.b16 %v641
        %v666 = vunpack.c.l.b16 %v642
        %v667 = vunpack.c.l.b16 %v643
        %v668 = vunpack.c.l.b16 %v644
        %v669 = vunpack.c.l.b16 %v645
        %v670 = vunpack.c.l.b16 %v646
        %v671 = vunpack.c.l.b16 %v647
        %v672 = vunpack.c.l.b16 %v648
        %v673 = vpack.c.b16 %v666, %v665
        %v674 = vpack.c.b16 %v668, %v667
        %v675 = vpack.c.b16 %v670, %v669
        %v676 = vpack.c.b16 %v672, %v671
        %v681 = vunpack.c.l.b16 %v649
        %v682 = vunpack.c.l.b16 %v650
        %v683 = vunpack.c.l.b16 %v651
        %v684 = vunpack.c.l.b16 %v652
        %v685 = vpack.c.b16 %v682, %v681
        %v686 = vpack.c.b16 %v684, %v683
        %vm689 = vcmask 261120
        %v691 = vsel %vm689, %v673, 0
        %v694 = vsel %vm689, %v674, 0
        %v697 = vsel %vm689, %v675, 0
        %v700 = vsel %vm689, %v676, 0
        %702 = vmatpush.bf16.msra.mxu0 0
        %703 = vmatpush.bf16.msra.mxu0 0
        %704 = vmatpush.bf16.msra.mxu0 0
        %705 = vmatpush.bf16.msra.mxu0 0
        %706 = vmatpush.bf16.msra.mxu0 0
        %707 = vmatpush.bf16.msra.mxu0 0
        %708 = vmatpush.bf16.msra.mxu0 %v686
        %709 = vmatpush.bf16.msra.mxu0 %v685
        %710 = vmatmul.bf16.gmra.mxu0 %v691
        %v711 = vpop.f32.mrf.mxu0
        %v712 = vadd.f32 %v655, %v711
        %v713 = vpop.f32.mrf.mxu0
        %v714 = vadd.f32 %v655, %v713
        %715 = vmatmul.bf16.gmra.mxu0 %v694
        %v716 = vpop.f32.mrf.mxu0
        %v717 = vadd.f32 %v655, %v716
        %v718 = vpop.f32.mrf.mxu0
        %v719 = vadd.f32 %v655, %v718
        %720 = vmatmul.bf16.gmra.mxu0 %v697
        %v721 = vpop.f32.mrf.mxu0
        %v722 = vadd.f32 %v655, %v721
        %v723 = vpop.f32.mrf.mxu0
        %v724 = vadd.f32 %v655, %v723
        %725 = vmatmul.bf16.gmra.mxu0 %v700
        %v726 = vpop.f32.mrf.mxu0
        %v727 = vadd.f32 %v655, %v726
        %v728 = vpop.f32.mrf.mxu0
        %v729 = vadd.f32 %v655, %v728
        %730 = vdwg.mxu0
        %731 = vst.msk [vmem:[#allocation3] sm:$0xff] %vm689, %v712
        %732 = vst.msk [vmem:[#allocation3 + $0x8] sm:$0xff] %vm689, %v714
        %733 = vst.msk [vmem:[#allocation3 + $0x10] sm:$0xff] %vm689, %v717
        %734 = vst.msk [vmem:[#allocation3 + $0x18] sm:$0xff] %vm689, %v719
        %735 = vst.msk [vmem:[#allocation3 + $0x20] sm:$0xff] %vm689, %v722
        %736 = vst.msk [vmem:[#allocation3 + $0x28] sm:$0xff] %vm689, %v724
        %737 = vst.msk [vmem:[#allocation3 + $0x30] sm:$0xff] %vm689, %v727
        %738 = vst.msk [vmem:[#allocation3 + $0x38] sm:$0xff] %vm689, %v729
        %s739 = smul.u32 %s28, 4
        %v740 = vld [vmem:[#allocation2] sm:$0xff]
        %v741 = vld [vmem:[#allocation2 + $0x8] sm:$0xff]
        %v742 = vstv %s739
        %vm743 = vcmp.gt.s32.totalorder %v635, %v742
        %vm744 = vcmp.gt.s32.totalorder %v636, %v742
        %v745 = vsel %vm743, 1, 0
        %v746 = vsel %vm744, 1, 0
        %v747 = vcvt.s32.f32 %v745
        %v748 = vcvt.s32.f32 %v746
        %750 = vset.pattern.permute.xlu0 0
        %751 = vperm.xlu0 %750, %v747
        %v752 = vpop.permute.xlu0 %751
        %755 = vset.pattern.permute.xlu0 0
        %756 = vperm.xlu0 %755, %v748
        %v757 = vpop.permute.xlu0 %756
        %v759 = vmul.f32 %v740, %v752
        %v760 = vmul.f32 %v741, %v757
        %v761 = vpack.c.bf16 %v760, %v759
        %v762 = vld [vmem:[#allocation3] sm:$0xff]
        %v763 = vld [vmem:[#allocation3 + $0x8] sm:$0xff]
        %v768 = vunpack.c.l.b16 %v637
        %v769 = vunpack.c.l.b16 %v638
        %v770 = vunpack.c.l.b16 %v639
        %v771 = vunpack.c.l.b16 %v640
        %v772 = vpack.c.b16 %v769, %v768
        %v773 = vpack.c.b16 %v771, %v770
        %v777 = vsel %vm689, %v761, 0
        %779 = vmatpush.bf16.msra.mxu0 0
        %780 = vmatpush.bf16.msra.mxu0 0
        %781 = vmatpush.bf16.msra.mxu0 0
        %782 = vmatpush.bf16.msra.mxu0 0
        %783 = vmatpush.bf16.msra.mxu0 0
        %784 = vmatpush.bf16.msra.mxu0 0
        %785 = vmatpush.bf16.msra.mxu0 %v773
        %786 = vmatpush.bf16.msra.mxu0 %v772
        %787 = vmatmul.bf16.gmra.mxu0 %v777
        %v788 = vpop.f32.mrf.mxu0
        %v789 = vadd.f32 0.0, %v788
        %v790 = vpop.f32.mrf.mxu0
        %v791 = vadd.f32 0.0, %v790
        %792 = vdwg.mxu0
        %v793 = vadd.f32 %v762, %v789
        %v794 = vadd.f32 %v763, %v791
        %v795 = vtanh.pop %v793
        %v796 = vtanh.pop %v794
        %797 = vst.msk [vmem:[#allocation3] sm:$0xff] %vm689, %v795
        %798 = vst.msk [vmem:[#allocation3 + $0x8] sm:$0xff] %vm689, %v796
        %s799 = sadd.s32 %s739, 1
        %v800 = vstv %s799
        %vm801 = vcmp.gt.s32.totalorder %v635, %v800
        %vm802 = vcmp.gt.s32.totalorder %v636, %v800
        %v803 = vsel %vm801, 1, 0
        %v804 = vsel %vm802, 1, 0
        %v805 = vcvt.s32.f32 %v803
        %v806 = vcvt.s32.f32 %v804
        %808 = vset.pattern.permute.xlu0 0
        %809 = vperm.xlu0 %808, %v805
        %v810 = vpop.permute.xlu0 %809
        %813 = vset.pattern.permute.xlu0 0
        %814 = vperm.xlu0 %813, %v806
        %v815 = vpop.permute.xlu0 %814
        %v817 = vmul.f32 %v795, %v810
        %v818 = vmul.f32 %v796, %v815
        %v819 = vpack.c.bf16 %v818, %v817
        %v820 = vld [vmem:[#allocation3 + $0x10] sm:$0xff]
        %v821 = vld [vmem:[#allocation3 + $0x18] sm:$0xff]
        %v823 = vsel %vm689, %v819, 0
        %825 = vmatpush.bf16.msra.mxu0 0
        %826 = vmatpush.bf16.msra.mxu0 0
        %827 = vmatpush.bf16.msra.mxu0 0
        %828 = vmatpush.bf16.msra.mxu0 0
        %829 = vmatpush.bf16.msra.mxu0 0
        %830 = vmatpush.bf16.msra.mxu0 0
        %831 = vmatpush.bf16.msra.mxu0 %v773
        %832 = vmatpush.bf16.msra.mxu0 %v772
        %833 = vmatmul.bf16.gmra.mxu0 %v823
        %v834 = vpop.f32.mrf.mxu0
        %v835 = vadd.f32 0.0, %v834
        %v836 = vpop.f32.mrf.mxu0
        %v837 = vadd.f32 0.0, %v836
        %838 = vdwg.mxu0
        %v839 = vadd.f32 %v820, %v835
        %v840 = vadd.f32 %v821, %v837
        %v841 = vtanh.pop %v839
        %v842 = vtanh.pop %v840
        %843 = vst.msk [vmem:[#allocation3 + $0x10] sm:$0xff] %vm689, %v841
        %844 = vst.msk [vmem:[#allocation3 + $0x18] sm:$0xff] %vm689, %v842
        %s845 = sadd.s32 %s739, 2
        %v846 = vstv %s845
        %vm847 = vcmp.gt.s32.totalorder %v635, %v846
        %vm848 = vcmp.gt.s32.totalorder %v636, %v846
        %v849 = vsel %vm847, 1, 0
        %v850 = vsel %vm848, 1, 0
        %v851 = vcvt.s32.f32 %v849
        %v852 = vcvt.s32.f32 %v850
        %854 = vset.pattern.permute.xlu0 0
        %855 = vperm.xlu0 %854, %v851
        %v856 = vpop.permute.xlu0 %855
        %859 = vset.pattern.permute.xlu0 0
        %860 = vperm.xlu0 %859, %v852
        %v861 = vpop.permute.xlu0 %860
        %v863 = vmul.f32 %v841, %v856
        %v864 = vmul.f32 %v842, %v861
        %v865 = vpack.c.bf16 %v864, %v863
        %v866 = vld [vmem:[#allocation3 + $0x20] sm:$0xff]
        %v867 = vld [vmem:[#allocation3 + $0x28] sm:$0xff]
        %v869 = vsel %vm689, %v865, 0
        %871 = vmatpush.bf16.msra.mxu0 0
        %872 = vmatpush.bf16.msra.mxu0 0
        %873 = vmatpush.bf16.msra.mxu0 0
        %874 = vmatpush.bf16.msra.mxu0 0
        %875 = vmatpush.bf16.msra.mxu0 0
        %876 = vmatpush.bf16.msra.mxu0 0
        %877 = vmatpush.bf16.msra.mxu0 %v773
        %878 = vmatpush.bf16.msra.mxu0 %v772
        %879 = vmatmul.bf16.gmra.mxu0 %v869
        %v880 = vpop.f32.mrf.mxu0
        %v881 = vadd.f32 0.0, %v880
        %v882 = vpop.f32.mrf.mxu0
        %v883 = vadd.f32 0.0, %v882
        %884 = vdwg.mxu0
        %v885 = vadd.f32 %v866, %v881
        %v886 = vadd.f32 %v867, %v883
        %v887 = vtanh.pop %v885
        %v888 = vtanh.pop %v886
        %889 = vst.msk [vmem:[#allocation3 + $0x20] sm:$0xff] %vm689, %v887
        %890 = vst.msk [vmem:[#allocation3 + $0x28] sm:$0xff] %vm689, %v888
        %s891 = sadd.s32 %s739, 3
        %v892 = vstv %s891
        %vm893 = vcmp.gt.s32.totalorder %v635, %v892
        %vm894 = vcmp.gt.s32.totalorder %v636, %v892
        %v895 = vsel %vm893, 1, 0
        %v896 = vsel %vm894, 1, 0
        %v897 = vcvt.s32.f32 %v895
        %v898 = vcvt.s32.f32 %v896
        %900 = vset.pattern.permute.xlu0 0
        %901 = vperm.xlu0 %900, %v897
        %v902 = vpop.permute.xlu0 %901
        %905 = vset.pattern.permute.xlu0 0
        %906 = vperm.xlu0 %905, %v898
        %v907 = vpop.permute.xlu0 %906
        %v909 = vmul.f32 %v887, %v902
        %v910 = vmul.f32 %v888, %v907
        %v911 = vpack.c.bf16 %v910, %v909
        %v912 = vld [vmem:[#allocation3 + $0x30] sm:$0xff]
        %v913 = vld [vmem:[#allocation3 + $0x38] sm:$0xff]
        %v915 = vsel %vm689, %v911, 0
        %917 = vmatpush.bf16.msra.mxu0 0
        %918 = vmatpush.bf16.msra.mxu0 0
        %919 = vmatpush.bf16.msra.mxu0 0
        %920 = vmatpush.bf16.msra.mxu0 0
        %921 = vmatpush.bf16.msra.mxu0 0
        %922 = vmatpush.bf16.msra.mxu0 0
        %923 = vmatpush.bf16.msra.mxu0 %v773
        %924 = vmatpush.bf16.msra.mxu0 %v772
        %925 = vmatmul.bf16.gmra.mxu0 %v915
        %v926 = vpop.f32.mrf.mxu0
        %v927 = vadd.f32 0.0, %v926
        %v928 = vpop.f32.mrf.mxu0
        %v929 = vadd.f32 0.0, %v928
        %930 = vdwg.mxu0
        %v931 = vadd.f32 %v912, %v927
        %v932 = vadd.f32 %v913, %v929
        %v933 = vtanh.pop %v931
        %v934 = vtanh.pop %v932
        %935 = vst.msk [vmem:[#allocation3 + $0x30] sm:$0xff] %vm689, %v933
        %936 = vst.msk [vmem:[#allocation3 + $0x38] sm:$0xff] %vm689, %v934
        %937 = vst.msk [vmem:[#allocation2] sm:$0xff] %vm689, %v933
        %938 = vst.msk [vmem:[#allocation2 + $0x8] sm:$0xff] %vm689, %v934
        %v939 = vld [vmem:[#allocation3] sm:$0xff]
        %v940 = vld [vmem:[#allocation3 + $0x8] sm:$0xff]
        %v941 = vld [vmem:[#allocation3 + $0x10] sm:$0xff]
        %v942 = vld [vmem:[#allocation3 + $0x18] sm:$0xff]
        %v943 = vld [vmem:[#allocation3 + $0x20] sm:$0xff]
        %v944 = vld [vmem:[#allocation3 + $0x28] sm:$0xff]
        %v945 = vld [vmem:[#allocation3 + $0x30] sm:$0xff]
        %v946 = vld [vmem:[#allocation3 + $0x38] sm:$0xff]
        %v947 = vpack.c.bf16 %v940, %v939
        %v948 = vpack.c.bf16 %v942, %v941
        %v949 = vpack.c.bf16 %v944, %v943
        %v950 = vpack.c.bf16 %v946, %v945
        %v951 = vld [vmem:[%s7] sm:$0xf]
        %v952 = vld [vmem:[%s7 + $0x4] sm:$0xf]
        %v953 = vld [vmem:[%s7 + $0x8] sm:$0xf]
        %v954 = vld [vmem:[%s7 + $0xc] sm:$0xf]
        %v955 = vld [vmem:[%s8] sm:$0x1]
        %v957 = vperm.slane %v955, 0
        %v963 = vunpack.c.l.b16 %v951
        %v964 = vunpack.c.l.b16 %v952
        %v965 = vunpack.c.l.b16 %v953
        %v966 = vunpack.c.l.b16 %v954
        %v967 = vpack.c.b16 %v964, %v963
        %v968 = vpack.c.b16 %v966, %v965
        %v972 = vsel %vm689, %v947, 0
        %v975 = vsel %vm689, %v948, 0
        %v978 = vsel %vm689, %v949, 0
        %v981 = vsel %vm689, %v950, 0
        %983 = vmatpush.bf16.msra.mxu0 0
        %984 = vmatpush.bf16.msra.mxu0 0
        %985 = vmatpush.bf16.msra.mxu0 0
        %986 = vmatpush.bf16.msra.mxu0 0
        %987 = vmatpush.bf16.msra.mxu0 0
        %988 = vmatpush.bf16.msra.mxu0 0
        %989 = vmatpush.bf16.msra.mxu0 %v968
        %990 = vmatpush.bf16.msra.mxu0 %v967
        %991 = vmatmul.bf16.gmra.mxu0 %v972
        %v992 = vpop.f32.mrf.mxu0
        %v993 = vadd.f32 %v957, %v992
        %v994 = vpop.f32.mrf.mxu0
        %v995 = vadd.f32 %v957, %v994
        %996 = vmatmul.bf16.gmra.mxu0 %v975
        %v997 = vpop.f32.mrf.mxu0
        %v998 = vadd.f32 %v957, %v997
        %v999 = vpop.f32.mrf.mxu0
        %v1000 = vadd.f32 %v957, %v999
        %1001 = vmatmul.bf16.gmra.mxu0 %v978
        %v1002 = vpop.f32.mrf.mxu0
        %v1003 = vadd.f32 %v957, %v1002
        %v1004 = vpop.f32.mrf.mxu0
        %v1005 = vadd.f32 %v957, %v1004
        %1006 = vmatmul.bf16.gmra.mxu0 %v981
        %v1007 = vpop.f32.mrf.mxu0
        %v1008 = vadd.f32 %v957, %v1007
        %v1009 = vpop.f32.mrf.mxu0
        %v1010 = vadd.f32 %v957, %v1009
        %1011 = vdwg.mxu0
        %v1012 = vlaneseq
        %v1013 = vand.u32 %v1012, 127
        %vm1014 = vcmp.lt.s32.totalorder %v1013, 6
        %v1015 = vsel %vm1014, %v993, -1e+30
        %v1016 = vsel %vm1014, %v995, -1e+30
        %v1017 = vsel %vm1014, %v998, -1e+30
        %v1018 = vsel %vm1014, %v1000, -1e+30
        %v1019 = vsel %vm1014, %v1003, -1e+30
        %v1020 = vsel %vm1014, %v1005, -1e+30
        %v1021 = vsel %vm1014, %v1008, -1e+30
        %v1022 = vsel %vm1014, %v1010, -1e+30
        %v1023 = vld [vmem:[%s561] sm:$0xff]
        %v1024 = vld [vmem:[%s561 + $0x8] sm:$0xff]
        %v1025 = vld [vmem:[%s561 + $0x10] sm:$0xff]
        %v1026 = vld [vmem:[%s561 + $0x18] sm:$0xff]
        %v1027 = vld [vmem:[%s561 + $0x20] sm:$0xff]
        %v1028 = vld [vmem:[%s561 + $0x28] sm:$0xff]
        %v1029 = vld [vmem:[%s561 + $0x30] sm:$0xff]
        %v1030 = vld [vmem:[%s561 + $0x38] sm:$0xff]
        %vm1031 = vcmp.ne.s32.totalorder %v1023, 4294967196
        %vm1032 = vcmp.ne.s32.totalorder %v1024, 4294967196
        %vm1033 = vcmp.ne.s32.totalorder %v1025, 4294967196
        %vm1034 = vcmp.ne.s32.totalorder %v1026, 4294967196
        %vm1035 = vcmp.ne.s32.totalorder %v1027, 4294967196
        %vm1036 = vcmp.ne.s32.totalorder %v1028, 4294967196
        %vm1037 = vcmp.ne.s32.totalorder %v1029, 4294967196
        %vm1038 = vcmp.ne.s32.totalorder %v1030, 4294967196
        %v1039 = vsel %vm1031, 1, 0
        %v1040 = vsel %vm1032, 1, 0
        %v1041 = vsel %vm1033, 1, 0
        %v1042 = vsel %vm1034, 1, 0
        %v1043 = vsel %vm1035, 1, 0
        %v1044 = vsel %vm1036, 1, 0
        %v1045 = vsel %vm1037, 1, 0
        %v1046 = vsel %vm1038, 1, 0
        %v1047 = vcvt.s32.f32 %v1039
        %v1048 = vcvt.s32.f32 %v1040
        %v1049 = vcvt.s32.f32 %v1041
        %v1050 = vcvt.s32.f32 %v1042
        %v1051 = vcvt.s32.f32 %v1043
        %v1052 = vcvt.s32.f32 %v1044
        %v1053 = vcvt.s32.f32 %v1045
        %v1054 = vcvt.s32.f32 %v1046
        %v1055 = vsel %vm1031, %v1023, 0
        %v1056 = vsel %vm1032, %v1024, 0
        %v1057 = vsel %vm1033, %v1025, 0
        %v1058 = vsel %vm1034, %v1026, 0
        %v1059 = vsel %vm1035, %v1027, 0
        %v1060 = vsel %vm1036, %v1028, 0
        %v1061 = vsel %vm1037, %v1029, 0
        %v1062 = vsel %vm1038, %v1030, 0
        %1063 = vset.pattern.permute.xlu0 0
        %1064 = vperm.xlu0 %1063, %v1055
        %v1065 = vpop.permute.xlu0 %1064
        %1066 = vset.pattern.permute.xlu0 0
        %1067 = vperm.xlu0 %1066, %v1056
        %v1068 = vpop.permute.xlu0 %1067
        %1069 = vset.pattern.permute.xlu0 0
        %1070 = vperm.xlu0 %1069, %v1057
        %v1071 = vpop.permute.xlu0 %1070
        %1072 = vset.pattern.permute.xlu0 0
        %1073 = vperm.xlu0 %1072, %v1058
        %v1074 = vpop.permute.xlu0 %1073
        %1075 = vset.pattern.permute.xlu0 0
        %1076 = vperm.xlu0 %1075, %v1059
        %v1077 = vpop.permute.xlu0 %1076
        %1078 = vset.pattern.permute.xlu0 0
        %1079 = vperm.xlu0 %1078, %v1060
        %v1080 = vpop.permute.xlu0 %1079
        %1081 = vset.pattern.permute.xlu0 0
        %1082 = vperm.xlu0 %1081, %v1061
        %v1083 = vpop.permute.xlu0 %1082
        %1084 = vset.pattern.permute.xlu0 0
        %1085 = vperm.xlu0 %1084, %v1062
        %v1086 = vpop.permute.xlu0 %1085
        %vm1087 = vcmp.eq.s32.totalorder %v1013, %v1065
        %vm1088 = vcmp.eq.s32.totalorder %v1013, %v1068
        %vm1089 = vcmp.eq.s32.totalorder %v1013, %v1071
        %vm1090 = vcmp.eq.s32.totalorder %v1013, %v1074
        %vm1091 = vcmp.eq.s32.totalorder %v1013, %v1077
        %vm1092 = vcmp.eq.s32.totalorder %v1013, %v1080
        %vm1093 = vcmp.eq.s32.totalorder %v1013, %v1083
        %vm1094 = vcmp.eq.s32.totalorder %v1013, %v1086
        %v1095 = vsel %vm1087, 1, 0
        %v1096 = vsel %vm1088, 1, 0
        %v1097 = vsel %vm1089, 1, 0
        %v1098 = vsel %vm1090, 1, 0
        %v1099 = vsel %vm1091, 1, 0
        %v1100 = vsel %vm1092, 1, 0
        %v1101 = vsel %vm1093, 1, 0
        %v1102 = vsel %vm1094, 1, 0
        %v1103 = vcvt.s32.f32 %v1095
        %v1104 = vcvt.s32.f32 %v1096
        %v1105 = vcvt.s32.f32 %v1097
        %v1106 = vcvt.s32.f32 %v1098
        %v1107 = vcvt.s32.f32 %v1099
        %v1108 = vcvt.s32.f32 %v1100
        %v1109 = vcvt.s32.f32 %v1101
        %v1110 = vcvt.s32.f32 %v1102
        %1111 = vmax.xlane.f32.xlu0 %v1015
        %v1112 = vpop.xlane.xlu0 %1111
        %1113 = vmax.xlane.f32.xlu0 %v1016
        %v1114 = vpop.xlane.xlu0 %1113
        %1115 = vmax.xlane.f32.xlu0 %v1017
        %v1116 = vpop.xlane.xlu0 %1115
        %1117 = vmax.xlane.f32.xlu0 %v1018
        %v1118 = vpop.xlane.xlu0 %1117
        %1119 = vmax.xlane.f32.xlu0 %v1019
        %v1120 = vpop.xlane.xlu0 %1119
        %1121 = vmax.xlane.f32.xlu0 %v1020
        %v1122 = vpop.xlane.xlu0 %1121
        %1123 = vmax.xlane.f32.xlu0 %v1021
        %v1124 = vpop.xlane.xlu0 %1123
        %1125 = vmax.xlane.f32.xlu0 %v1022
        %v1126 = vpop.xlane.xlu0 %1125
        %v1127 = vsub.f32 %v1015, %v1112
        %v1128 = vsub.f32 %v1016, %v1114
        %v1129 = vsub.f32 %v1017, %v1116
        %v1130 = vsub.f32 %v1018, %v1118
        %v1131 = vsub.f32 %v1019, %v1120
        %v1132 = vsub.f32 %v1020, %v1122
        %v1133 = vsub.f32 %v1021, %v1124
        %v1134 = vsub.f32 %v1022, %v1126
        %v1135 = vmul.f32 %v1127, 1.442695
        %v1136 = vpow.pop %v1135
        %v1137 = vmul.f32 %v1128, 1.442695
        %v1138 = vpow.pop %v1137
        %v1139 = vmul.f32 %v1129, 1.442695
        %v1140 = vpow.pop %v1139
        %v1141 = vmul.f32 %v1130, 1.442695
        %v1142 = vpow.pop %v1141
        %v1143 = vmul.f32 %v1131, 1.442695
        %v1144 = vpow.pop %v1143
        %v1145 = vmul.f32 %v1132, 1.442695
        %v1146 = vpow.pop %v1145
        %v1147 = vmul.f32 %v1133, 1.442695
        %v1148 = vpow.pop %v1147
        %v1149 = vmul.f32 %v1134, 1.442695
        %v1150 = vpow.pop %v1149
        %1151 = vadd.xlane.f32.xlu0 %v1136
        %v1152 = vpop.xlane.xlu0 %1151
        %1153 = vadd.xlane.f32.xlu0 %v1138
        %v1154 = vpop.xlane.xlu0 %1153
        %1155 = vadd.xlane.f32.xlu0 %v1140
        %v1156 = vpop.xlane.xlu0 %1155
        %1157 = vadd.xlane.f32.xlu0 %v1142
        %v1158 = vpop.xlane.xlu0 %1157
        %1159 = vadd.xlane.f32.xlu0 %v1144
        %v1160 = vpop.xlane.xlu0 %1159
        %1161 = vadd.xlane.f32.xlu0 %v1146
        %v1162 = vpop.xlane.xlu0 %1161
        %1163 = vadd.xlane.f32.xlu0 %v1148
        %v1164 = vpop.xlane.xlu0 %1163
        %1165 = vadd.xlane.f32.xlu0 %v1150
        %v1166 = vpop.xlane.xlu0 %1165
        %v1167 = vlog2.pop %v1152
        %v1168 = vmul.f32 %v1167, 0.6931472
        %v1169 = vlog2.pop %v1154
        %v1170 = vmul.f32 %v1169, 0.6931472
        %v1171 = vlog2.pop %v1156
        %v1172 = vmul.f32 %v1171, 0.6931472
        %v1173 = vlog2.pop %v1158
        %v1174 = vmul.f32 %v1173, 0.6931472
        %v1175 = vlog2.pop %v1160
        %v1176 = vmul.f32 %v1175, 0.6931472
        %v1177 = vlog2.pop %v1162
        %v1178 = vmul.f32 %v1177, 0.6931472
        %v1179 = vlog2.pop %v1164
        %v1180 = vmul.f32 %v1179, 0.6931472
        %v1181 = vlog2.pop %v1166
        %v1182 = vmul.f32 %v1181, 0.6931472
        %v1183 = vadd.f32 %v1112, %v1168
        %v1184 = vadd.f32 %v1114, %v1170
        %v1185 = vadd.f32 %v1116, %v1172
        %v1186 = vadd.f32 %v1118, %v1174
        %v1187 = vadd.f32 %v1120, %v1176
        %v1188 = vadd.f32 %v1122, %v1178
        %v1189 = vadd.f32 %v1124, %v1180
        %v1190 = vadd.f32 %v1126, %v1182
        %v1191 = vmul.f32 %v1015, %v1103
        %v1192 = vmul.f32 %v1016, %v1104
        %v1193 = vmul.f32 %v1017, %v1105
        %v1194 = vmul.f32 %v1018, %v1106
        %v1195 = vmul.f32 %v1019, %v1107
        %v1196 = vmul.f32 %v1020, %v1108
        %v1197 = vmul.f32 %v1021, %v1109
        %v1198 = vmul.f32 %v1022, %v1110
        %1199 = vadd.xlane.f32.xlu0 %v1191
        %v1200 = vpop.xlane.xlu0 %1199
        %1201 = vadd.xlane.f32.xlu0 %v1192
        %v1202 = vpop.xlane.xlu0 %1201
        %1203 = vadd.xlane.f32.xlu0 %v1193
        %v1204 = vpop.xlane.xlu0 %1203
        %1205 = vadd.xlane.f32.xlu0 %v1194
        %v1206 = vpop.xlane.xlu0 %1205
        %1207 = vadd.xlane.f32.xlu0 %v1195
        %v1208 = vpop.xlane.xlu0 %1207
        %1209 = vadd.xlane.f32.xlu0 %v1196
        %v1210 = vpop.xlane.xlu0 %1209
        %1211 = vadd.xlane.f32.xlu0 %v1197
        %v1212 = vpop.xlane.xlu0 %1211
        %1213 = vadd.xlane.f32.xlu0 %v1198
        %v1214 = vpop.xlane.xlu0 %1213
        %v1215 = vsub.f32 %v1183, %v1200
        %v1216 = vsub.f32 %v1184, %v1202
        %v1217 = vsub.f32 %v1185, %v1204
        %v1218 = vsub.f32 %v1186, %v1206
        %v1219 = vsub.f32 %v1187, %v1208
        %v1220 = vsub.f32 %v1188, %v1210
        %v1221 = vsub.f32 %v1189, %v1212
        %v1222 = vsub.f32 %v1190, %v1214
        %v1223 = vmul.f32 %v1215, %v1047
        %v1224 = vmul.f32 %v1216, %v1048
        %v1225 = vmul.f32 %v1217, %v1049
        %v1226 = vmul.f32 %v1218, %v1050
        %v1227 = vmul.f32 %v1219, %v1051
        %v1228 = vmul.f32 %v1220, %v1052
        %v1229 = vmul.f32 %v1221, %v1053
        %v1230 = vmul.f32 %v1222, %v1054
        %v1231 = vsub.f32 0.0, %v993
        %v1232 = vsub.f32 0.0, %v995
        %v1233 = vsub.f32 0.0, %v998
        %v1234 = vsub.f32 0.0, %v1000
        %v1235 = vsub.f32 0.0, %v1003
        %v1236 = vsub.f32 0.0, %v1005
        %v1237 = vsub.f32 0.0, %v1008
        %v1238 = vsub.f32 0.0, %v1010
        %v1239 = vmul.f32 %v1231, 1.442695
        %v1240 = vpow.pop %v1239
        %v1241 = vmul.f32 %v1232, 1.442695
        %v1242 = vpow.pop %v1241
        %v1243 = vmul.f32 %v1233, 1.442695
        %v1244 = vpow.pop %v1243
        %v1245 = vmul.f32 %v1234, 1.442695
        %v1246 = vpow.pop %v1245
        %v1247 = vmul.f32 %v1235, 1.442695
        %v1248 = vpow.pop %v1247
        %v1249 = vmul.f32 %v1236, 1.442695
        %v1250 = vpow.pop %v1249
        %v1251 = vmul.f32 %v1237, 1.442695
        %v1252 = vpow.pop %v1251
        %v1253 = vmul.f32 %v1238, 1.442695
        %v1254 = vpow.pop %v1253
        %v1255 = vadd.f32 %v1240, 1.0
        %v1256 = vadd.f32 %v1242, 1.0
        %v1257 = vadd.f32 %v1244, 1.0
        %v1258 = vadd.f32 %v1246, 1.0
        %v1259 = vadd.f32 %v1248, 1.0
        %v1260 = vadd.f32 %v1250, 1.0
        %v1261 = vadd.f32 %v1252, 1.0
        %v1262 = vadd.f32 %v1254, 1.0
        %v1263 = vrcp.pop %v1255
        %v1264 = vmul.f32 %v1255, %v1263
        %v1265 = vsub.f32 1.0, %v1264
        %v1266 = vmul.f32 %v1263, %v1265
        %v1267 = vadd.f32 %v1263, %v1266
        %vm1268 = vweird.f32 %v1255
        %vm1269 = vweird.f32 %v1263
        %vm1270 = vmor %vm1268, %vm1269
        %v1271 = vsel %vm1270, %v1263, %v1267
        %v1272 = vand.u32 2147483647, %v1255
        %vm1273 = vcmp.eq.f32.partialorder %v1272, 8.507059e+37
        %v1274 = vand.u32 %v1255, 2147483648
        %v1275 = vor.u32 1.1754944e-38, %v1274
        %v1276 = vsel %vm1273, %v1275, %v1271
        %v1277 = vmul.f32 1.0, %v1276
        %v1278 = vrcp.pop %v1256
        %v1279 = vmul.f32 %v1256, %v1278
        %v1280 = vsub.f32 1.0, %v1279
        %v1281 = vmul.f32 %v1278, %v1280
        %v1282 = vadd.f32 %v1278, %v1281
        %vm1283 = vweird.f32 %v1256
        %vm1284 = vweird.f32 %v1278
        %vm1285 = vmor %vm1283, %vm1284
        %v1286 = vsel %vm1285, %v1278, %v1282
        %v1287 = vand.u32 2147483647, %v1256
        %vm1288 = vcmp.eq.f32.partialorder %v1287, 8.507059e+37
        %v1289 = vand.u32 %v1256, 2147483648
        %v1290 = vor.u32 1.1754944e-38, %v1289
        %v1291 = vsel %vm1288, %v1290, %v1286
        %v1292 = vmul.f32 1.0, %v1291
        %v1293 = vrcp.pop %v1257
        %v1294 = vmul.f32 %v1257, %v1293
        %v1295 = vsub.f32 1.0, %v1294
        %v1296 = vmul.f32 %v1293, %v1295
        %v1297 = vadd.f32 %v1293, %v1296
        %vm1298 = vweird.f32 %v1257
        %vm1299 = vweird.f32 %v1293
        %vm1300 = vmor %vm1298, %vm1299
        %v1301 = vsel %vm1300, %v1293, %v1297
        %v1302 = vand.u32 2147483647, %v1257
        %vm1303 = vcmp.eq.f32.partialorder %v1302, 8.507059e+37
        %v1304 = vand.u32 %v1257, 2147483648
        %v1305 = vor.u32 1.1754944e-38, %v1304
        %v1306 = vsel %vm1303, %v1305, %v1301
        %v1307 = vmul.f32 1.0, %v1306
        %v1308 = vrcp.pop %v1258
        %v1309 = vmul.f32 %v1258, %v1308
        %v1310 = vsub.f32 1.0, %v1309
        %v1311 = vmul.f32 %v1308, %v1310
        %v1312 = vadd.f32 %v1308, %v1311
        %vm1313 = vweird.f32 %v1258
        %vm1314 = vweird.f32 %v1308
        %vm1315 = vmor %vm1313, %vm1314
        %v1316 = vsel %vm1315, %v1308, %v1312
        %v1317 = vand.u32 2147483647, %v1258
        %vm1318 = vcmp.eq.f32.partialorder %v1317, 8.507059e+37
        %v1319 = vand.u32 %v1258, 2147483648
        %v1320 = vor.u32 1.1754944e-38, %v1319
        %v1321 = vsel %vm1318, %v1320, %v1316
        %v1322 = vmul.f32 1.0, %v1321
        %v1323 = vrcp.pop %v1259
        %v1324 = vmul.f32 %v1259, %v1323
        %v1325 = vsub.f32 1.0, %v1324
        %v1326 = vmul.f32 %v1323, %v1325
        %v1327 = vadd.f32 %v1323, %v1326
        %vm1328 = vweird.f32 %v1259
        %vm1329 = vweird.f32 %v1323
        %vm1330 = vmor %vm1328, %vm1329
        %v1331 = vsel %vm1330, %v1323, %v1327
        %v1332 = vand.u32 2147483647, %v1259
        %vm1333 = vcmp.eq.f32.partialorder %v1332, 8.507059e+37
        %v1334 = vand.u32 %v1259, 2147483648
        %v1335 = vor.u32 1.1754944e-38, %v1334
        %v1336 = vsel %vm1333, %v1335, %v1331
        %v1337 = vmul.f32 1.0, %v1336
        %v1338 = vrcp.pop %v1260
        %v1339 = vmul.f32 %v1260, %v1338
        %v1340 = vsub.f32 1.0, %v1339
        %v1341 = vmul.f32 %v1338, %v1340
        %v1342 = vadd.f32 %v1338, %v1341
        %vm1343 = vweird.f32 %v1260
        %vm1344 = vweird.f32 %v1338
        %vm1345 = vmor %vm1343, %vm1344
        %v1346 = vsel %vm1345, %v1338, %v1342
        %v1347 = vand.u32 2147483647, %v1260
        %vm1348 = vcmp.eq.f32.partialorder %v1347, 8.507059e+37
        %v1349 = vand.u32 %v1260, 2147483648
        %v1350 = vor.u32 1.1754944e-38, %v1349
        %v1351 = vsel %vm1348, %v1350, %v1346
        %v1352 = vmul.f32 1.0, %v1351
        %v1353 = vrcp.pop %v1261
        %v1354 = vmul.f32 %v1261, %v1353
        %v1355 = vsub.f32 1.0, %v1354
        %v1356 = vmul.f32 %v1353, %v1355
        %v1357 = vadd.f32 %v1353, %v1356
        %vm1358 = vweird.f32 %v1261
        %vm1359 = vweird.f32 %v1353
        %vm1360 = vmor %vm1358, %vm1359
        %v1361 = vsel %vm1360, %v1353, %v1357
        %v1362 = vand.u32 2147483647, %v1261
        %vm1363 = vcmp.eq.f32.partialorder %v1362, 8.507059e+37
        %v1364 = vand.u32 %v1261, 2147483648
        %v1365 = vor.u32 1.1754944e-38, %v1364
        %v1366 = vsel %vm1363, %v1365, %v1361
        %v1367 = vmul.f32 1.0, %v1366
        %v1368 = vrcp.pop %v1262
        %v1369 = vmul.f32 %v1262, %v1368
        %v1370 = vsub.f32 1.0, %v1369
        %v1371 = vmul.f32 %v1368, %v1370
        %v1372 = vadd.f32 %v1368, %v1371
        %vm1373 = vweird.f32 %v1262
        %vm1374 = vweird.f32 %v1368
        %vm1375 = vmor %vm1373, %vm1374
        %v1376 = vsel %vm1375, %v1368, %v1372
        %v1377 = vand.u32 2147483647, %v1262
        %vm1378 = vcmp.eq.f32.partialorder %v1377, 8.507059e+37
        %v1379 = vand.u32 %v1262, 2147483648
        %v1380 = vor.u32 1.1754944e-38, %v1379
        %v1381 = vsel %vm1378, %v1380, %v1376
        %v1382 = vmul.f32 1.0, %v1381
        %v1383 = vld [vmem:[%s568] sm:$0xff]
        %v1384 = vld [vmem:[%s568 + $0x8] sm:$0xff]
        %v1385 = vld [vmem:[%s568 + $0x10] sm:$0xff]
        %v1386 = vld [vmem:[%s568 + $0x18] sm:$0xff]
        %v1387 = vld [vmem:[%s568 + $0x20] sm:$0xff]
        %v1388 = vld [vmem:[%s568 + $0x28] sm:$0xff]
        %v1389 = vld [vmem:[%s568 + $0x30] sm:$0xff]
        %v1390 = vld [vmem:[%s568 + $0x38] sm:$0xff]
        %1399 = vrot.lane.b32.xlu0 %v1383, 6
        %v1400 = vpop.permute.xlu0 %1399
        %1401 = vrot.lane.b32.xlu0 %v1384, 6
        %v1402 = vpop.permute.xlu0 %1401
        %1403 = vrot.lane.b32.xlu0 %v1385, 6
        %v1404 = vpop.permute.xlu0 %1403
        %1405 = vrot.lane.b32.xlu0 %v1386, 6
        %v1406 = vpop.permute.xlu0 %1405
        %1407 = vrot.lane.b32.xlu0 %v1387, 6
        %v1408 = vpop.permute.xlu0 %1407
        %1409 = vrot.lane.b32.xlu0 %v1388, 6
        %v1410 = vpop.permute.xlu0 %1409
        %1411 = vrot.lane.b32.xlu0 %v1389, 6
        %v1412 = vpop.permute.xlu0 %1411
        %1413 = vrot.lane.b32.xlu0 %v1390, 6
        %v1414 = vpop.permute.xlu0 %1413
        %v1423 = vsub.f32 %v1277, %v1400
        %v1424 = vsub.f32 %v1292, %v1402
        %v1425 = vsub.f32 %v1307, %v1404
        %v1426 = vsub.f32 %v1322, %v1406
        %v1427 = vsub.f32 %v1337, %v1408
        %v1428 = vsub.f32 %v1352, %v1410
        %v1429 = vsub.f32 %v1367, %v1412
        %v1430 = vsub.f32 %v1382, %v1414
        %v1431 = vmul.f32 %v1423, %v1423
        %v1432 = vmul.f32 %v1424, %v1424
        %v1433 = vmul.f32 %v1425, %v1425
        %v1434 = vmul.f32 %v1426, %v1426
        %v1435 = vmul.f32 %v1427, %v1427
        %v1436 = vmul.f32 %v1428, %v1428
        %v1437 = vmul.f32 %v1429, %v1429
        %v1438 = vmul.f32 %v1430, %v1430
        %1440 = vset.pattern.permute.xlu0 0
        %1441 = vperm.xlu0 %1440, %v1047
        %v1442 = vpop.permute.xlu0 %1441
        %1445 = vset.pattern.permute.xlu0 0
        %1446 = vperm.xlu0 %1445, %v1048
        %v1447 = vpop.permute.xlu0 %1446
        %1450 = vset.pattern.permute.xlu0 0
        %1451 = vperm.xlu0 %1450, %v1049
        %v1452 = vpop.permute.xlu0 %1451
        %1455 = vset.pattern.permute.xlu0 0
        %1456 = vperm.xlu0 %1455, %v1050
        %v1457 = vpop.permute.xlu0 %1456
        %1460 = vset.pattern.permute.xlu0 0
        %1461 = vperm.xlu0 %1460, %v1051
        %v1462 = vpop.permute.xlu0 %1461
        %1465 = vset.pattern.permute.xlu0 0
        %1466 = vperm.xlu0 %1465, %v1052
        %v1467 = vpop.permute.xlu0 %1466
        %1470 = vset.pattern.permute.xlu0 0
        %1471 = vperm.xlu0 %1470, %v1053
        %v1472 = vpop.permute.xlu0 %1471
        %1475 = vset.pattern.permute.xlu0 0
        %1476 = vperm.xlu0 %1475, %v1054
        %v1477 = vpop.permute.xlu0 %1476
        %v1479 = vmul.f32 %v1431, %v1442
        %v1480 = vmul.f32 %v1432, %v1447
        %v1481 = vmul.f32 %v1433, %v1452
        %v1482 = vmul.f32 %v1434, %v1457
        %v1483 = vmul.f32 %v1435, %v1462
        %v1484 = vmul.f32 %v1436, %v1467
        %v1485 = vmul.f32 %v1437, %v1472
        %v1486 = vmul.f32 %v1438, %v1477
        %vm1487 = vcmp.eq.s32.totalorder %v1013, 0
        %1489 = vset.pattern.permute.xlu0 0
        %1490 = vperm.xlu0 %1489, %v1223
        %v1491 = vpop.permute.xlu0 %1490
        %1494 = vset.pattern.permute.xlu0 0
        %1495 = vperm.xlu0 %1494, %v1224
        %v1496 = vpop.permute.xlu0 %1495
        %1499 = vset.pattern.permute.xlu0 0
        %1500 = vperm.xlu0 %1499, %v1225
        %v1501 = vpop.permute.xlu0 %1500
        %1504 = vset.pattern.permute.xlu0 0
        %1505 = vperm.xlu0 %1504, %v1226
        %v1506 = vpop.permute.xlu0 %1505
        %1509 = vset.pattern.permute.xlu0 0
        %1510 = vperm.xlu0 %1509, %v1227
        %v1511 = vpop.permute.xlu0 %1510
        %1514 = vset.pattern.permute.xlu0 0
        %1515 = vperm.xlu0 %1514, %v1228
        %v1516 = vpop.permute.xlu0 %1515
        %1519 = vset.pattern.permute.xlu0 0
        %1520 = vperm.xlu0 %1519, %v1229
        %v1521 = vpop.permute.xlu0 %1520
        %1524 = vset.pattern.permute.xlu0 0
        %1525 = vperm.xlu0 %1524, %v1230
        %v1526 = vpop.permute.xlu0 %1525
        %v1528 = vsel %vm1487, %v1491, 0.0
        %v1529 = vsel %vm1487, %v1496, 0.0
        %v1530 = vsel %vm1487, %v1501, 0.0
        %v1531 = vsel %vm1487, %v1506, 0.0
        %v1532 = vsel %vm1487, %v1511, 0.0
        %v1533 = vsel %vm1487, %v1516, 0.0
        %v1534 = vsel %vm1487, %v1521, 0.0
        %v1535 = vsel %vm1487, %v1526, 0.0
        %vm1536 = vcmp.eq.s32.totalorder %v1013, 1
        %1538 = vset.pattern.permute.xlu0 6
        %1539 = vperm.xlu0 %1538, %v1479
        %v1540 = vpop.permute.xlu0 %1539
        %1543 = vset.pattern.permute.xlu0 6
        %1544 = vperm.xlu0 %1543, %v1480
        %v1545 = vpop.permute.xlu0 %1544
        %1548 = vset.pattern.permute.xlu0 6
        %1549 = vperm.xlu0 %1548, %v1481
        %v1550 = vpop.permute.xlu0 %1549
        %1553 = vset.pattern.permute.xlu0 6
        %1554 = vperm.xlu0 %1553, %v1482
        %v1555 = vpop.permute.xlu0 %1554
        %1558 = vset.pattern.permute.xlu0 6
        %1559 = vperm.xlu0 %1558, %v1483
        %v1560 = vpop.permute.xlu0 %1559
        %1563 = vset.pattern.permute.xlu0 6
        %1564 = vperm.xlu0 %1563, %v1484
        %v1565 = vpop.permute.xlu0 %1564
        %1568 = vset.pattern.permute.xlu0 6
        %1569 = vperm.xlu0 %1568, %v1485
        %v1570 = vpop.permute.xlu0 %1569
        %1573 = vset.pattern.permute.xlu0 6
        %1574 = vperm.xlu0 %1573, %v1486
        %v1575 = vpop.permute.xlu0 %1574
        %v1577 = vsel %vm1536, %v1540, 0.0
        %v1578 = vsel %vm1536, %v1545, 0.0
        %v1579 = vsel %vm1536, %v1550, 0.0
        %v1580 = vsel %vm1536, %v1555, 0.0
        %v1581 = vsel %vm1536, %v1560, 0.0
        %v1582 = vsel %vm1536, %v1565, 0.0
        %v1583 = vsel %vm1536, %v1570, 0.0
        %v1584 = vsel %vm1536, %v1575, 0.0
        %v1585 = vadd.f32 %v1528, %v1577
        %v1586 = vadd.f32 %v1529, %v1578
        %v1587 = vadd.f32 %v1530, %v1579
        %v1588 = vadd.f32 %v1531, %v1580
        %v1589 = vadd.f32 %v1532, %v1581
        %v1590 = vadd.f32 %v1533, %v1582
        %v1591 = vadd.f32 %v1534, %v1583
        %v1592 = vadd.f32 %v1535, %v1584
        %vm1593 = vcmp.eq.s32.totalorder %v1013, 2
        %1594 = vset.pattern.permute.xlu0 7
        %1595 = vperm.xlu0 %1594, %v1479
        %v1596 = vpop.permute.xlu0 %1595
        %1598 = vset.pattern.permute.xlu0 7
        %1599 = vperm.xlu0 %1598, %v1480
        %v1600 = vpop.permute.xlu0 %1599
        %1602 = vset.pattern.permute.xlu0 7
        %1603 = vperm.xlu0 %1602, %v1481
        %v1604 = vpop.permute.xlu0 %1603
        %1606 = vset.pattern.permute.xlu0 7
        %1607 = vperm.xlu0 %1606, %v1482
        %v1608 = vpop.permute.xlu0 %1607
        %1610 = vset.pattern.permute.xlu0 7
        %1611 = vperm.xlu0 %1610, %v1483
        %v1612 = vpop.permute.xlu0 %1611
        %1614 = vset.pattern.permute.xlu0 7
        %1615 = vperm.xlu0 %1614, %v1484
        %v1616 = vpop.permute.xlu0 %1615
        %1618 = vset.pattern.permute.xlu0 7
        %1619 = vperm.xlu0 %1618, %v1485
        %v1620 = vpop.permute.xlu0 %1619
        %1622 = vset.pattern.permute.xlu0 7
        %1623 = vperm.xlu0 %1622, %v1486
        %v1624 = vpop.permute.xlu0 %1623
        %v1626 = vsel %vm1593, %v1596, 0.0
        %v1627 = vsel %vm1593, %v1600, 0.0
        %v1628 = vsel %vm1593, %v1604, 0.0
        %v1629 = vsel %vm1593, %v1608, 0.0
        %v1630 = vsel %vm1593, %v1612, 0.0
        %v1631 = vsel %vm1593, %v1616, 0.0
        %v1632 = vsel %vm1593, %v1620, 0.0
        %v1633 = vsel %vm1593, %v1624, 0.0
        %v1634 = vadd.f32 %v1585, %v1626
        %v1635 = vadd.f32 %v1586, %v1627
        %v1636 = vadd.f32 %v1587, %v1628
        %v1637 = vadd.f32 %v1588, %v1629
        %v1638 = vadd.f32 %v1589, %v1630
        %v1639 = vadd.f32 %v1590, %v1631
        %v1640 = vadd.f32 %v1591, %v1632
        %v1641 = vadd.f32 %v1592, %v1633
        %vm1642 = vcmp.eq.s32.totalorder %v1013, 3
        %v1643 = vsel %vm1642, %v1442, 0.0
        %v1644 = vsel %vm1642, %v1447, 0.0
        %v1645 = vsel %vm1642, %v1452, 0.0
        %v1646 = vsel %vm1642, %v1457, 0.0
        %v1647 = vsel %vm1642, %v1462, 0.0
        %v1648 = vsel %vm1642, %v1467, 0.0
        %v1649 = vsel %vm1642, %v1472, 0.0
        %v1650 = vsel %vm1642, %v1477, 0.0
        %v1651 = vadd.f32 %v1634, %v1643
        %v1652 = vadd.f32 %v1635, %v1644
        %v1653 = vadd.f32 %v1636, %v1645
        %v1654 = vadd.f32 %v1637, %v1646
        %v1655 = vadd.f32 %v1638, %v1647
        %v1656 = vadd.f32 %v1639, %v1648
        %v1657 = vadd.f32 %v1640, %v1649
        %v1658 = vadd.f32 %v1641, %v1650
        %v1659 = vld [vmem:[%s613] sm:$0xff]
        %v1660 = vadd.f32 %v1651, %v1652
        %v1661 = vadd.f32 %v1660, %v1653
        %v1662 = vadd.f32 %v1661, %v1654
        %v1663 = vadd.f32 %v1662, %v1655
        %v1664 = vadd.f32 %v1663, %v1656
        %v1665 = vadd.f32 %v1664, %v1657
        %v1666 = vadd.f32 %v1665, %v1658
        %v1667 = vrot.slane %v1666, 4
        %v1668 = vadd.f32 %v1666, %v1667
        %v1669 = vrot.slane %v1668, 2
        %v1670 = vadd.f32 %v1668, %v1669
        %v1671 = vrot.slane %v1670, 1
        %v1672 = vadd.f32 %v1670, %v1671
        %v1673 = vadd.f32 %v1659, %v1672
        %1674 = vst [vmem:[%s613] sm:$0xff] %v1673
        %s1675 = sand.u32 %s258, 1
        %s1676 = scalar_lea.sflag [#allocation8], %s1675
        %s1677 = sand.u32 %s258, 1
        %s1678 = smul.addr %s1677, 8
        %s1679 = scalar_lea.vmem [#allocation7], %s1678
        // Predicated region
        $region178: #{tpu_custom_call.1} parent=160 // pred_check
          %p1680 = pneg %p268
        $region179: #{tpu_custom_call.1} parent=160 // pred_check_branch
          %1682 = sbr.rel (%p1680) target = $region181
        $region180: #{tpu_custom_call.1} parent=160 // pred_region
          %1684 = vsyncadd %s1676, 0
          %s1685 = smul.addr %s27, 8
          %s1686 = scalar_lea.hbm %s9, %s1685
          %s1688 = sshll.u32 %s1679, 4
          %s1689 = int_to_ptr.vmem [resolvable:$true] %s1688
          %s1690 = sshll.u32 %s1686, 4
          %s1691 = int_to_ptr.hbm [resolvable:$true] %s1690
          %1693 = dma.vmem_to_hbm [thread:$0]  %s1689, 128, %s1691, %s1676
        $region181: #{tpu_custom_call.1} parent=160 // pred_fallthru
          _
      $region161: #{tpu_custom_call.1} parent=5 // pred_fallthru
        _
      %p1694 = scmp.le.s32.totalorder 2, %s18
      // Predicated region
      $region182: #{tpu_custom_call.1} parent=5 // pred_check
        %p1695 = pneg %p1694
      $region183: #{tpu_custom_call.1} parent=5 // pred_check_branch
        %1697 = sbr.rel (%p1695) target = $region185
      $region184: #{tpu_custom_call.1} parent=5 // pred_region
        %s1698 = ssub.s32 %s18, 2
        // Predicated region
        $region186: #{tpu_custom_call.1} parent=184 // pred_check
          %p1699 = pneg %p274
        $region187: #{tpu_custom_call.1} parent=184 // pred_check_branch
          %1701 = sbr.rel (%p1699) target = $region189
        $region188: #{tpu_custom_call.1} parent=184 // pred_region
          %s1702 = sand.u32 %s259, 1
          %s1703 = scalar_lea.sflag [#allocation8], %s1702
          %s1704 = sand.u32 %s259, 1
          %s1705 = smul.addr %s1704, 8
          %s1706 = scalar_lea.vmem [#allocation7], %s1705
          %1708 = dma.done %s1703, 128
        $region189: #{tpu_custom_call.1} parent=184 // pred_fallthru
          _
      $region185: #{tpu_custom_call.1} parent=5 // pred_fallthru
        _
    $region6: #{tpu_custom_call.1} parent=1 // loop_footer
      %s22 = sadd.s32 1, %s18
    $region7: #{tpu_custom_call.1} parent=1 // loop_footer_branch
      %17 = sbr.rel target = $region3
    $region8: #{tpu_custom_call.1} parent=1 // loop_exit
      _
    %1709 = vsyncpa [#allocation8], 1
    %s1710 = scalar_lea.sflag [#allocation8], 1
    %1711 = vsyncpa %s1710, 1

</llo_original>
